<compile_context>
chip_gen: v7x
topology: tpu7x:2x2x1
jax: 0.10.0
libtpu: 0.0.40
codegen_flags: <defaults>
</compile_context>

<pallas_src>
import math

import jax
import jax.numpy as jnp
from jax import lax
from jax.experimental import pallas as pl
from jax.experimental.pallas import tpu as pltpu


_COMPUTE_DTYPE = jnp.bfloat16


# ----------------------------------------------------------------------------
# Tile-size helpers
# ----------------------------------------------------------------------------
def _pick_tile(dim, target, align):
    """Tile for a (sub)lane-constrained dim: full dim if small, else aligned."""
    if dim <= target:
        return dim                      # full extent -> always legal
    blk = (target // align) * align
    b = blk
    while b >= align:                   # prefer an exact divisor (no ragged tail)
        if dim % b == 0:
            return b
        b -= align
    return blk                          # ragged last block; Pallas masks it


def _pick_divisor(dim, target):
    """Largest block <= target that exactly divides dim."""
    blk = min(target, dim)
    while dim % blk != 0:
        blk -= 1
    return blk


def _pick_batch_block(batch, target):
    if batch <= target:
        return batch
    blk = (target // 8) * 8
    while blk >= 8:
        if batch % blk == 0:
            return blk
        blk -= 8
    return batch


# ----------------------------------------------------------------------------
# Tiled matmul + bias kernel (used for the hoisted input projection and fc)
# ----------------------------------------------------------------------------
def _matmul_bias_kernel(x_ref, w_ref, b_ref, o_ref):
    o_ref[...] = (jnp.dot(x_ref[...], w_ref[...],
                          preferred_element_type=jnp.float32)
                  + b_ref[...]).astype(o_ref.dtype)


def matmul_bias(x, w_t, bias, *, tm_target=256, tn_target=512,
                out_dtype=jnp.float32):
    """x: (M, K); w_t: (K, N); bias: (1, N) f32. Returns (M, N) f32."""
    M, K = x.shape
    K2, N = w_t.shape
    assert K == K2
    tm = _pick_tile(M, tm_target, 8)
    tn = _pick_tile(N, tn_target, 128)
    grid = (pl.cdiv(M, tm), pl.cdiv(N, tn))
    return pl.pallas_call(
        _matmul_bias_kernel,
        out_shape=jax.ShapeDtypeStruct((M, N), out_dtype),
        grid_spec=pltpu.PrefetchScalarGridSpec(
            num_scalar_prefetch=0,
            grid=grid,
            in_specs=[
                pl.BlockSpec((tm, K), lambda i, j: (i, 0)),
                pl.BlockSpec((K, tn), lambda i, j: (0, j)),
                pl.BlockSpec((1, tn), lambda i, j: (0, j)),
            ],
            out_specs=pl.BlockSpec((tm, tn), lambda i, j: (i, j)),
        ),
        compiler_params=pltpu.CompilerParams(
            dimension_semantics=("parallel", "parallel"),
            vmem_limit_bytes=64 * 1024 * 1024,
        ),
    )(x, w_t, bias)


# ----------------------------------------------------------------------------
# LSTM recurrence kernel (time-blocked, masked for packed-sequence semantics)
# ----------------------------------------------------------------------------
def _lstm_kernel(gx_ref, h0_ref, c0_ref, len_ref, whh_t_ref,
                 y_ref, hn_ref, cn_ref, h_scr, c_scr):
    tb = pl.program_id(1)              # time-block index (innermost, serial)
    n_tb = pl.num_programs(1)
    Tt = gx_ref.shape[0]
    H = h0_ref.shape[-1]

    @pl.when(tb == 0)
    def _():
        h_scr[...] = h0_ref[...]
        c_scr[...] = c0_ref[...]

    whh = whh_t_ref[...]               # (H, 4H) bf16
    lens = len_ref[...]                # (Bb, 1) int32
    t_base = tb * Tt

    def step(i, carry):
        h, c = carry                   # f32 (Bb, H)
        # gates = G_x[t] + h @ W_hh^T     (input projection was precomputed)
        gates = gx_ref[i] + jnp.dot(h.astype(whh.dtype), whh,
                                    preferred_element_type=jnp.float32)
        i_g = jax.nn.sigmoid(gates[:, 0 * H:1 * H])
        f_g = jax.nn.sigmoid(gates[:, 1 * H:2 * H])
        g_g = jnp.tanh(gates[:, 2 * H:3 * H])
        o_g = jax.nn.sigmoid(gates[:, 3 * H:4 * H])
        c_new = f_g * c + i_g * g_g
        h_new = o_g * jnp.tanh(c_new)
        # pack_padded_sequence semantics: state only updates while t < len[b];
        # padded output positions are zero (matches pad_packed_sequence).
        mask = lens > (t_base + i)
        c_nxt = jnp.where(mask, c_new, c)
        h_nxt = jnp.where(mask, h_new, h)
        y_ref[i] = jnp.where(mask, h_new, jnp.zeros_like(h_new))
        return h_nxt, c_nxt

    h_fin, c_fin = lax.fori_loop(0, Tt, step, (h_scr[...], c_scr[...]),
                                 unroll=True)
    h_scr[...] = h_fin
    c_scr[...] = c_fin

    # Only write the final-state outputs on the last time block.
    @pl.when(tb == n_tb - 1)
    def _():
        hn_ref[...] = h_fin
        cn_ref[...] = c_fin


def lstm_layer(gx_tm, h0, c0, lengths, whh_t, *, time_block=16,
               batch_block=256):
    """gx_tm: (T, B, 4H) f32 precomputed input projection (incl. bias).
    Returns y (T, B, H) f32, h_n, c_n (B, H) f32."""
    T, B, G4 = gx_tm.shape
    H = h0.shape[-1]
    assert G4 == 4 * H
    Tt = _pick_divisor(T, time_block)
    Bb = _pick_batch_block(B, batch_block)
    nB, nT = B // Bb, T // Tt
    len_col = lengths.astype(jnp.int32).reshape(B, 1)

    grid_spec = pltpu.PrefetchScalarGridSpec(
        num_scalar_prefetch=0,
        grid=(nB, nT),
        in_specs=[
            pl.BlockSpec((Tt, Bb, 4 * H), lambda b, t: (t, b, 0)),   # G_x
            pl.BlockSpec((Bb, H), lambda b, t: (b, 0)),              # h0
            pl.BlockSpec((Bb, H), lambda b, t: (b, 0)),              # c0
            pl.BlockSpec((Bb, 1), lambda b, t: (b, 0)),              # lengths
            pl.BlockSpec((H, 4 * H), lambda b, t: (0, 0)),           # W_hh^T
        ],
        out_specs=[
            pl.BlockSpec((Tt, Bb, H), lambda b, t: (t, b, 0)),       # y
            pl.BlockSpec((Bb, H), lambda b, t: (b, 0)),              # h_n
            pl.BlockSpec((Bb, H), lambda b, t: (b, 0)),              # c_n
        ],
        scratch_shapes=[
            pltpu.VMEM((Bb, H), jnp.float32),                        # h carry
            pltpu.VMEM((Bb, H), jnp.float32),                        # c carry
        ],
    )

    y, h_n, c_n = pl.pallas_call(
        _lstm_kernel,
        out_shape=(
            jax.ShapeDtypeStruct((T, B, H), jnp.float32),
            jax.ShapeDtypeStruct((B, H), jnp.float32),
            jax.ShapeDtypeStruct((B, H), jnp.float32),
        ),
        grid_spec=grid_spec,
        compiler_params=pltpu.CompilerParams(
            dimension_semantics=("parallel", "arbitrary"),
            vmem_limit_bytes=64 * 1024 * 1024,
        ),
    )(gx_tm, h0, c0, len_col, whh_t)
    return y, h_n, c_n


# ----------------------------------------------------------------------------
# Parameter preparation (one-time, outside the jitted forward)
# ----------------------------------------------------------------------------
def prepare_params(params, compute_dtype=_COMPUTE_DTYPE):
    return {
        "emb": params["emb"],                                              # f32
        "wih_t": jnp.transpose(params["w_ih"]).astype(compute_dtype),      # (E, 4H)
        "whh_t": jnp.transpose(params["w_hh"]).astype(compute_dtype),      # (H, 4H)
        "bias": (params["b_ih"] + params["b_hh"]).reshape(1, -1)
                .astype(jnp.float32),                                      # (1, 4H)
        "fc_w_t": jnp.transpose(params["fc_w"]).astype(compute_dtype),     # (H, V)
        "fc_b": params["fc_b"].reshape(1, -1).astype(jnp.float32),         # (1, V)
    }


# ----------------------------------------------------------------------------
# Full forward (n_layers=1, tie_weights=False, eval mode -> dropout = identity)
# ----------------------------------------------------------------------------
@jax.jit
def lm_lstm_forward(src, h0, c0, seq_lengths, prepared):
    """src: (B, T) int32. Returns (prediction (B, V, T), (h_n, c_n))."""
    emb = jnp.take(prepared["emb"], src, axis=0)                 # (B, T, E)
    # LockedDropout(weight_drop_locked_i): identity in eval mode.
    x_tm = jnp.transpose(emb, (1, 0, 2))                         # (T, B, E)
    T, B, E = x_tm.shape
    H = h0.shape[-1]
    V = prepared["fc_w_t"].shape[1]

    # Hoisted input projection: one big MXU-friendly matmul over all T*B rows.
    gx_flat = matmul_bias(
        x_tm.reshape(T * B, E).astype(prepared["wih_t"].dtype),
        prepared["wih_t"], prepared["bias"])                     # (T*B, 4H) f32
    gx_tm = gx_flat.reshape(T, B, 4 * H)

    y_tm, h_n, c_n = lstm_layer(gx_tm, h0, c0, seq_lengths, prepared["whh_t"])

    # LockedDropout(weight_drop_locked_o): identity in eval mode.
    logits = matmul_bias(
        y_tm.reshape(T * B, H).astype(prepared["fc_w_t"].dtype),
        prepared["fc_w_t"], prepared["fc_b"])                    # (T*B, V) f32
    logits = logits.reshape(T, B, V)
    prediction = jnp.transpose(logits, (1, 2, 0))                # (B, V, T)
    return prediction, (h_n[None], c_n[None])                    # hidden (1, B, H)


# ----------------------------------------------------------------------------
# Pure-JAX f32 reference (for correctness check)
# ----------------------------------------------------------------------------
def ref_forward(src, h0, c0, seq_lengths, params):
    emb = jnp.take(params["emb"], src, axis=0).astype(jnp.float32)  # (B, T, E)
    B, T, _ = emb.shape
    h, c = h0, c0
    ys = []
    for t in range(T):
        x_t = emb[:, t, :]
        gates = (x_t @ params["w_ih"].T + h @ params["w_hh"].T
                 + params["b_ih"] + params["b_hh"])
        i_g, f_g, g_g, o_g = jnp.split(gates, 4, axis=-1)
        i_g, f_g, o_g = jax.nn.sigmoid(i_g), jax.nn.sigmoid(f_g), jax.nn.sigmoid(o_g)
        g_g = jnp.tanh(g_g)
        c_new = f_g * c + i_g * g_g
        h_new = o_g * jnp.tanh(c_new)
        mask = (seq_lengths > t)[:, None]
        c = jnp.where(mask, c_new, c)
        h = jnp.where(mask, h_new, h)
        ys.append(jnp.where(mask, h_new, 0.0))
    y = jnp.stack(ys, axis=1)                                    # (B, T, H)
    logits = y @ params["fc_w"].T + params["fc_b"]               # (B, T, V)
    return jnp.transpose(logits, (0, 2, 1)), (h[None], c[None])


# ----------------------------------------------------------------------------
# Deterministic parameter init (mirrors init_weights / PyTorch defaults)
# ----------------------------------------------------------------------------
def init_params(key, vocab, emb_size, hidden_size):
    ks = jax.random.split(key, 7)
    r_emb = 0.1
    r = 1.0 / math.sqrt(hidden_size)
    return {
        "emb": jax.random.uniform(ks[0], (vocab, emb_size), jnp.float32, -r_emb, r_emb),
        "w_ih": jax.random.uniform(ks[1], (4 * hidden_size, emb_size), jnp.float32, -r, r),
        "w_hh": jax.random.uniform(ks[2], (4 * hidden_size, hidden_size), jnp.float32, -r, r),
        "b_ih": jax.random.uniform(ks[3], (4 * hidden_size,), jnp.float32, -r, r),
        "b_hh": jax.random.uniform(ks[4], (4 * hidden_size,), jnp.float32, -r, r),
        "fc_w": jax.random.uniform(ks[5], (vocab, hidden_size), jnp.float32, -r, r),
        "fc_b": jnp.zeros((vocab,), jnp.float32),
    }


if __name__ == "__main__":
    # Small shapes consistent with the module: n_layers=1, tie_weights=False.
    B, T, E, H, V = 2, 8, 32, 32, 16
    PAD = 0

    key = jax.random.PRNGKey(0)
    k_tok, k_par = jax.random.split(key)

    params = init_params(k_par, V, E, H)
    prepared = prepare_params(params)

    # Token ids (avoid pad id for valid positions), sorted-decreasing lengths
    # (pack_padded_sequence default enforce_sorted=True).
    src = jax.random.randint(k_tok, (B, T), 1, V, dtype=jnp.int32)
    seq_lengths = jnp.array([T, 5], dtype=jnp.int32)
    pad_mask = jnp.arange(T)[None, :] < seq_lengths[:, None]
    src = jnp.where(pad_mask, src, PAD)

    h0 = jnp.zeros((B, H), jnp.float32)   # init_hidden -> zeros
    c0 = jnp.zeros((B, H), jnp.float32)

    pred, (h_n, c_n) = lm_lstm_forward(src, h0, c0, seq_lengths, prepared)
    jax.block_until_ready(pred)

    pred_ref, (h_ref, c_ref) = ref_forward(src, h0, c0, seq_lengths, params)
    assert pred.shape == (B, V, T), pred.shape
    # bf16 matmul inputs (f32 accumulation) => relaxed tolerance vs f32 reference.
    assert jnp.allclose(pred, pred_ref, atol=2e-2, rtol=2e-2), "prediction mismatch"
    assert jnp.allclose(h_n, h_ref, atol=2e-2, rtol=2e-2), "h_n mismatch"
    assert jnp.allclose(c_n, c_ref, atol=2e-2, rtol=2e-2), "c_n mismatch"

    # TODO(synk): LockedDropout (training-mode bernoulli masks) and multi-layer /
    # tie_weights variants are not exercised; eval-mode single-layer path only.
    print("KERNEL_OK")
</pallas_src>

<mosaic_0001>
module attributes {stable_mosaic.version = 11 : i64} {
  func.func @_matmul_bias_kernel(%arg0: i32, %arg1: i32, %arg2: memref<16x32xbf16, #tpu.memory_space<vmem>>, %arg3: memref<32x128xbf16, #tpu.memory_space<vmem>>, %arg4: memref<1x128xf32, #tpu.memory_space<vmem>>, %arg5: memref<16x128xf32, #tpu.memory_space<vmem>>) attributes {dimension_semantics = [#tpu.dimension_semantics<parallel>, #tpu.dimension_semantics<parallel>], iteration_bounds = array<i64: 1, 1>, scalar_prefetch = 0 : i64, scratch_operands = 0 : i64, tpu.core_type = #tpu.core_type<tc>, window_params = [{transform_indices = @transform_0, window_bounds = array<i64: 16, 32>}, {transform_indices = @transform_1, window_bounds = array<i64: 32, 128>}, {transform_indices = @transform_2, window_bounds = array<i64: 1, 128>}, {transform_indices = @transform_3, window_bounds = array<i64: 16, 128>}]} {
    %c0 = arith.constant 0 : index
    %c0_0 = arith.constant 0 : index
    %0 = vector.load %arg2[%c0, %c0_0] : memref<16x32xbf16, #tpu.memory_space<vmem>>, vector<16x32xbf16>
    %c0_1 = arith.constant 0 : index
    %c0_2 = arith.constant 0 : index
    %1 = vector.load %arg3[%c0_1, %c0_2] : memref<32x128xbf16, #tpu.memory_space<vmem>>, vector<32x128xbf16>
    %cst = arith.constant dense<0.000000e+00> : vector<16x128xf32>
    %2 = tpu.matmul %0, %1, %cst {dimension_numbers = #tpu.dot_dimension_numbers<[1], [0], [0], [1], [0, 0, 1, 1], [], []>} : vector<16x32xbf16>, vector<32x128xbf16>, vector<16x128xf32> -> vector<16x128xf32>
    %c0_3 = arith.constant 0 : index
    %c0_4 = arith.constant 0 : index
    %3 = vector.load %arg4[%c0_3, %c0_4] : memref<1x128xf32, #tpu.memory_space<vmem>>, vector<1x128xf32>
    %4 = vector.broadcast %3 : vector<1x128xf32> to vector<16x128xf32>
    %5 = arith.addf %2, %4 : vector<16x128xf32>
    %c0_5 = arith.constant 0 : index
    %c0_6 = arith.constant 0 : index
    %6 = vector.load %arg5[%c0_5, %c0_6] : memref<16x128xf32, #tpu.memory_space<vmem>>, vector<16x128xf32>
    tpu.vector_store %arg5[%c0_5, %c0_6], %5 {strides = array<i32>} : memref<16x128xf32, #tpu.memory_space<vmem>>, vector<16x128xf32>,
    return
  }
  func.func @transform_0(%arg0: i32, %arg1: i32) -> (i32, i32) {
    %c0_i32 = arith.constant 0 : i32
    %c0_i32_0 = arith.constant 0 : i32
    return %arg0, %c0_i32 : i32, i32
  }
  func.func @transform_1(%arg0: i32, %arg1: i32) -> (i32, i32) {
    %c0_i32 = arith.constant 0 : i32
    %c0_i32_0 = arith.constant 0 : i32
    return %c0_i32, %arg1 : i32, i32
  }
  func.func @transform_2(%arg0: i32, %arg1: i32) -> (i32, i32) {
    %c0_i32 = arith.constant 0 : i32
    %c0_i32_0 = arith.constant 0 : i32
    return %c0_i32, %arg1 : i32, i32
  }
  func.func @transform_3(%arg0: i32, %arg1: i32) -> (i32, i32) {
    %c0_i32 = arith.constant 0 : i32
    return %arg0, %arg1 : i32, i32
  }
}

module attributes {stable_mosaic.version = 11 : i64} {
  func.func @_matmul_bias_kernel(%arg0: i32, %arg1: i32, %arg2: memref<16x32xbf16, #tpu.memory_space<vmem>>, %arg3: memref<32x16xbf16, #tpu.memory_space<vmem>>, %arg4: memref<1x16xf32, #tpu.memory_space<vmem>>, %arg5: memref<16x16xf32, #tpu.memory_space<vmem>>) attributes {dimension_semantics = [#tpu.dimension_semantics<parallel>, #tpu.dimension_semantics<parallel>], iteration_bounds = array<i64: 1, 1>, scalar_prefetch = 0 : i64, scratch_operands = 0 : i64, tpu.core_type = #tpu.core_type<tc>, window_params = [{transform_indices = @transform_0, window_bounds = array<i64: 16, 32>}, {transform_indices = @transform_1, window_bounds = array<i64: 32, 16>}, {transform_indices = @transform_2, window_bounds = array<i64: 1, 16>}, {transform_indices = @transform_3, window_bounds = array<i64: 16, 16>}]} {
    %c0 = arith.constant 0 : index
    %c0_0 = arith.constant 0 : index
    %0 = vector.load %arg2[%c0, %c0_0] : memref<16x32xbf16, #tpu.memory_space<vmem>>, vector<16x32xbf16>
    %c0_1 = arith.constant 0 : index
    %c0_2 = arith.constant 0 : index
    %1 = vector.load %arg3[%c0_1, %c0_2] : memref<32x16xbf16, #tpu.memory_space<vmem>>, vector<32x16xbf16>
    %cst = arith.constant dense<0.000000e+00> : vector<16x16xf32>
    %2 = tpu.matmul %0, %1, %cst {dimension_numbers = #tpu.dot_dimension_numbers<[1], [0], [0], [1], [0, 0, 1, 1], [], []>} : vector<16x32xbf16>, vector<32x16xbf16>, vector<16x16xf32> -> vector<16x16xf32>
    %c0_3 = arith.constant 0 : index
    %c0_4 = arith.constant 0 : index
    %3 = vector.load %arg4[%c0_3, %c0_4] : memref<1x16xf32, #tpu.memory_space<vmem>>, vector<1x16xf32>
    %4 = vector.broadcast %3 : vector<1x16xf32> to vector<16x16xf32>
    %5 = arith.addf %2, %4 : vector<16x16xf32>
    %c0_5 = arith.constant 0 : index
    %c0_6 = arith.constant 0 : index
    %6 = vector.load %arg5[%c0_5, %c0_6] : memref<16x16xf32, #tpu.memory_space<vmem>>, vector<16x16xf32>
    tpu.vector_store %arg5[%c0_5, %c0_6], %5 {strides = array<i32>} : memref<16x16xf32, #tpu.memory_space<vmem>>, vector<16x16xf32>,
    return
  }
  func.func @transform_0(%arg0: i32, %arg1: i32) -> (i32, i32) {
    %c0_i32 = arith.constant 0 : i32
    %c0_i32_0 = arith.constant 0 : i32
    return %arg0, %c0_i32 : i32, i32
  }
  func.func @transform_1(%arg0: i32, %arg1: i32) -> (i32, i32) {
    %c0_i32 = arith.constant 0 : i32
    %c0_i32_0 = arith.constant 0 : i32
    return %c0_i32, %arg1 : i32, i32
  }
  func.func @transform_2(%arg0: i32, %arg1: i32) -> (i32, i32) {
    %c0_i32 = arith.constant 0 : i32
    %c0_i32_0 = arith.constant 0 : i32
    return %c0_i32, %arg1 : i32, i32
  }
  func.func @transform_3(%arg0: i32, %arg1: i32) -> (i32, i32) {
    %c0_i32 = arith.constant 0 : i32
    return %arg0, %arg1 : i32, i32
  }
}

module attributes {stable_mosaic.version = 11 : i64} {
  func.func @_lstm_kernel(%arg0: i32, %arg1: i32, %arg2: memref<8x2x128xf32, #tpu.memory_space<vmem>>, %arg3: memref<2x32xf32, #tpu.memory_space<vmem>>, %arg4: memref<2x32xf32, #tpu.memory_space<vmem>>, %arg5: memref<2x1xi32, #tpu.memory_space<vmem>>, %arg6: memref<32x128xbf16, #tpu.memory_space<vmem>>, %arg7: memref<8x2x32xf32, #tpu.memory_space<vmem>>, %arg8: memref<2x32xf32, #tpu.memory_space<vmem>>, %arg9: memref<2x32xf32, #tpu.memory_space<vmem>>, %arg10: memref<2x32xf32, #tpu.memory_space<vmem>>, %arg11: memref<2x32xf32, #tpu.memory_space<vmem>>) attributes {dimension_semantics = [#tpu.dimension_semantics<parallel>, #tpu.dimension_semantics<arbitrary>], iteration_bounds = array<i64: 1, 1>, scalar_prefetch = 0 : i64, scratch_operands = 2 : i64, tpu.core_type = #tpu.core_type<tc>, window_params = [{transform_indices = @transform_0, window_bounds = array<i64: 8, 2, 128>}, {transform_indices = @transform_1, window_bounds = array<i64: 2, 32>}, {transform_indices = @transform_2, window_bounds = array<i64: 2, 32>}, {transform_indices = @transform_3, window_bounds = array<i64: 2, 1>}, {pipeline_mode = #tpu.pipeline_mode<synchronous>, transform_indices = @transform_4, window_bounds = array<i64: 32, 128>}, {transform_indices = @transform_5, window_bounds = array<i64: 8, 2, 32>}, {transform_indices = @transform_6, window_bounds = array<i64: 2, 32>}, {transform_indices = @transform_7, window_bounds = array<i64: 2, 32>}]} {
    %c0_i32 = arith.constant 0 : i32
    %0 = arith.cmpi eq, %arg1, %c0_i32 : i32
    %1 = arith.extui %0 : i1 to i32
    %c0_i32_0 = arith.constant 0 : i32
    %2 = arith.cmpi ne, %1, %c0_i32_0 : i32
    scf.if %2 {
      %c0_87 = arith.constant 0 : index
      %c0_88 = arith.constant 0 : index
      %397 = vector.load %arg3[%c0_87, %c0_88] : memref<2x32xf32, #tpu.memory_space<vmem>>, vector<2x32xf32>
      %c0_89 = arith.constant 0 : index
      %c0_90 = arith.constant 0 : index
      %398 = vector.load %arg10[%c0_89, %c0_90] : memref<2x32xf32, #tpu.memory_space<vmem>>, vector<2x32xf32>
      tpu.vector_store %arg10[%c0_89, %c0_90], %397 {strides = array<i32>} : memref<2x32xf32, #tpu.memory_space<vmem>>, vector<2x32xf32>,
      %c0_91 = arith.constant 0 : index
      %c0_92 = arith.constant 0 : index
      %399 = vector.load %arg4[%c0_91, %c0_92] : memref<2x32xf32, #tpu.memory_space<vmem>>, vector<2x32xf32>
      %c0_93 = arith.constant 0 : index
      %c0_94 = arith.constant 0 : index
      %400 = vector.load %arg11[%c0_93, %c0_94] : memref<2x32xf32, #tpu.memory_space<vmem>>, vector<2x32xf32>
      tpu.vector_store %arg11[%c0_93, %c0_94], %399 {strides = array<i32>} : memref<2x32xf32, #tpu.memory_space<vmem>>, vector<2x32xf32>,
    } else {
    }
    %c0 = arith.constant 0 : index
    %c0_1 = arith.constant 0 : index
    %3 = vector.load %arg6[%c0, %c0_1] : memref<32x128xbf16, #tpu.memory_space<vmem>>, vector<32x128xbf16>
    %c0_2 = arith.constant 0 : index
    %c0_3 = arith.constant 0 : index
    %4 = vector.load %arg5[%c0_2, %c0_3] : memref<2x1xi32, #tpu.memory_space<vmem>>, vector<2x1xi32>
    %c8_i32 = arith.constant 8 : i32
    %5 = arith.muli %arg1, %c8_i32 : i32
    %c0_4 = arith.constant 0 : index
    %c0_5 = arith.constant 0 : index
    %6 = vector.load %arg10[%c0_4, %c0_5] : memref<2x32xf32, #tpu.memory_space<vmem>>, vector<2x32xf32>
    %c0_6 = arith.constant 0 : index
    %c0_7 = arith.constant 0 : index
    %7 = vector.load %arg11[%c0_6, %c0_7] : memref<2x32xf32, #tpu.memory_space<vmem>>, vector<2x32xf32>
    %c0_i32_8 = arith.constant 0 : i32
    %8 = arith.index_cast %c0_i32_8 : i32 to index
    %c0_9 = arith.constant 0 : index
    %c0_10 = arith.constant 0 : index
    %9 = vector.load %arg2[%8, %c0_9, %c0_10] : memref<8x2x128xf32, #tpu.memory_space<vmem>>, vector<1x2x128xf32>
    %10 = vector.shape_cast %9 : vector<1x2x128xf32> to vector<2x128xf32>
    %11 = arith.truncf %6 : vector<2x32xf32> to vector<2x32xbf16>
    %cst = arith.constant dense<0.000000e+00> : vector<2x128xf32>
    %12 = tpu.matmul %11, %3, %cst {dimension_numbers = #tpu.dot_dimension_numbers<[1], [0], [0], [1], [0, 0, 1, 1], [], []>} : vector<2x32xbf16>, vector<32x128xbf16>, vector<2x128xf32> -> vector<2x128xf32>
    %13 = arith.addf %10, %12 : vector<2x128xf32>
    %14 = vector.extract_strided_slice %13 {offsets = [0, 0], sizes = [2, 32], strides = [1, 1]} : vector<2x128xf32> to vector<2x32xf32>
    %15 = arith.negf %14 : vector<2x32xf32>
    %16 = math.exp %15 : vector<2x32xf32>
    %cst_11 = arith.constant 1.000000e+00 : f32
    %17 = vector.broadcast %cst_11 : f32 to vector<2x32xf32>
    %18 = arith.addf %17, %16 : vector<2x32xf32>
    %19 = arith.divf %17, %18 : vector<2x32xf32>
    %20 = vector.extract_strided_slice %13 {offsets = [0, 32], sizes = [2, 32], strides = [1, 1]} : vector<2x128xf32> to vector<2x32xf32>
    %21 = arith.negf %20 : vector<2x32xf32>
    %22 = math.exp %21 : vector<2x32xf32>
    %cst_12 = arith.constant 1.000000e+00 : f32
    %23 = vector.broadcast %cst_12 : f32 to vector<2x32xf32>
    %24 = arith.addf %23, %22 : vector<2x32xf32>
    %25 = arith.divf %23, %24 : vector<2x32xf32>
    %26 = vector.extract_strided_slice %13 {offsets = [0, 64], sizes = [2, 32], strides = [1, 1]} : vector<2x128xf32> to vector<2x32xf32>
    %27 = math.tanh %26 : vector<2x32xf32>
    %28 = vector.extract_strided_slice %13 {offsets = [0, 96], sizes = [2, 32], strides = [1, 1]} : vector<2x128xf32> to vector<2x32xf32>
    %29 = arith.negf %28 : vector<2x32xf32>
    %30 = math.exp %29 : vector<2x32xf32>
    %cst_13 = arith.constant 1.000000e+00 : f32
    %31 = vector.broadcast %cst_13 : f32 to vector<2x32xf32>
    %32 = arith.addf %31, %30 : vector<2x32xf32>
    %33 = arith.divf %31, %32 : vector<2x32xf32>
    %34 = arith.mulf %25, %7 : vector<2x32xf32>
    %35 = arith.mulf %19, %27 : vector<2x32xf32>
    %36 = arith.addf %34, %35 : vector<2x32xf32>
    %37 = math.tanh %36 : vector<2x32xf32>
    %38 = arith.mulf %33, %37 : vector<2x32xf32>
    %39 = arith.addi %5, %c0_i32_8 : i32
    %40 = vector.broadcast %39 : i32 to vector<2x1xi32>
    %41 = arith.cmpi sgt, %4, %40 : vector<2x1xi32>
    %42 = vector.shape_cast %41 : vector<2x1xi1> to vector<2x1xi1>
    %43 = vector.broadcast %42 : vector<2x1xi1> to vector<2x32xi1>
    %44 = arith.select %43, %36, %7 : vector<2x32xi1>, vector<2x32xf32>
    %45 = vector.shape_cast %41 : vector<2x1xi1> to vector<2x1xi1>
    %46 = vector.broadcast %45 : vector<2x1xi1> to vector<2x32xi1>
    %47 = arith.select %46, %38, %6 : vector<2x32xi1>, vector<2x32xf32>
    %cst_14 = arith.constant 0.000000e+00 : f32
    %48 = vector.broadcast %cst_14 : f32 to vector<2x32xf32>
    %49 = vector.shape_cast %41 : vector<2x1xi1> to vector<2x1xi1>
    %50 = vector.broadcast %49 : vector<2x1xi1> to vector<2x32xi1>
    %51 = arith.select %50, %38, %48 : vector<2x32xi1>, vector<2x32xf32>
    %52 = arith.index_cast %c0_i32_8 : i32 to index
    %c0_15 = arith.constant 0 : index
    %c0_16 = arith.constant 0 : index
    %53 = vector.load %arg7[%52, %c0_15, %c0_16] : memref<8x2x32xf32, #tpu.memory_space<vmem>>, vector<1x2x32xf32>
    %54 = vector.shape_cast %53 : vector<1x2x32xf32> to vector<2x32xf32>
    %55 = vector.shape_cast %51 : vector<2x32xf32> to vector<1x2x32xf32>
    tpu.vector_store %arg7[%52, %c0_15, %c0_16], %55 {strides = array<i32>} : memref<8x2x32xf32, #tpu.memory_space<vmem>>, vector<1x2x32xf32>,
    %c1_i32 = arith.constant 1 : i32
    %56 = arith.index_cast %c1_i32 : i32 to index
    %c0_17 = arith.constant 0 : index
    %c0_18 = arith.constant 0 : index
    %57 = vector.load %arg2[%56, %c0_17, %c0_18] : memref<8x2x128xf32, #tpu.memory_space<vmem>>, vector<1x2x128xf32>
    %58 = vector.shape_cast %57 : vector<1x2x128xf32> to vector<2x128xf32>
    %59 = arith.truncf %47 : vector<2x32xf32> to vector<2x32xbf16>
    %cst_19 = arith.constant dense<0.000000e+00> : vector<2x128xf32>
    %60 = tpu.matmul %59, %3, %cst_19 {dimension_numbers = #tpu.dot_dimension_numbers<[1], [0], [0], [1], [0, 0, 1, 1], [], []>} : vector<2x32xbf16>, vector<32x128xbf16>, vector<2x128xf32> -> vector<2x128xf32>
    %61 = arith.addf %58, %60 : vector<2x128xf32>
    %62 = vector.extract_strided_slice %61 {offsets = [0, 0], sizes = [2, 32], strides = [1, 1]} : vector<2x128xf32> to vector<2x32xf32>
    %63 = arith.negf %62 : vector<2x32xf32>
    %64 = math.exp %63 : vector<2x32xf32>
    %cst_20 = arith.constant 1.000000e+00 : f32
    %65 = vector.broadcast %cst_20 : f32 to vector<2x32xf32>
    %66 = arith.addf %65, %64 : vector<2x32xf32>
    %67 = arith.divf %65, %66 : vector<2x32xf32>
    %68 = vector.extract_strided_slice %61 {offsets = [0, 32], sizes = [2, 32], strides = [1, 1]} : vector<2x128xf32> to vector<2x32xf32>
    %69 = arith.negf %68 : vector<2x32xf32>
    %70 = math.exp %69 : vector<2x32xf32>
    %cst_21 = arith.constant 1.000000e+00 : f32
    %71 = vector.broadcast %cst_21 : f32 to vector<2x32xf32>
    %72 = arith.addf %71, %70 : vector<2x32xf32>
    %73 = arith.divf %71, %72 : vector<2x32xf32>
    %74 = vector.extract_strided_slice %61 {offsets = [0, 64], sizes = [2, 32], strides = [1, 1]} : vector<2x128xf32> to vector<2x32xf32>
    %75 = math.tanh %74 : vector<2x32xf32>
    %76 = vector.extract_strided_slice %61 {offsets = [0, 96], sizes = [2, 32], strides = [1, 1]} : vector<2x128xf32> to vector<2x32xf32>
    %77 = arith.negf %76 : vector<2x32xf32>
    %78 = math.exp %77 : vector<2x32xf32>
    %cst_22 = arith.constant 1.000000e+00 : f32
    %79 = vector.broadcast %cst_22 : f32 to vector<2x32xf32>
    %80 = arith.addf %79, %78 : vector<2x32xf32>
    %81 = arith.divf %79, %80 : vector<2x32xf32>
    %82 = arith.mulf %73, %44 : vector<2x32xf32>
    %83 = arith.mulf %67, %75 : vector<2x32xf32>
    %84 = arith.addf %82, %83 : vector<2x32xf32>
    %85 = math.tanh %84 : vector<2x32xf32>
    %86 = arith.mulf %81, %85 : vector<2x32xf32>
    %87 = arith.addi %5, %c1_i32 : i32
    %88 = vector.broadcast %87 : i32 to vector<2x1xi32>
    %89 = arith.cmpi sgt, %4, %88 : vector<2x1xi32>
    %90 = vector.shape_cast %89 : vector<2x1xi1> to vector<2x1xi1>
    %91 = vector.broadcast %90 : vector<2x1xi1> to vector<2x32xi1>
    %92 = arith.select %91, %84, %44 : vector<2x32xi1>, vector<2x32xf32>
    %93 = vector.shape_cast %89 : vector<2x1xi1> to vector<2x1xi1>
    %94 = vector.broadcast %93 : vector<2x1xi1> to vector<2x32xi1>
    %95 = arith.select %94, %86, %47 : vector<2x32xi1>, vector<2x32xf32>
    %cst_23 = arith.constant 0.000000e+00 : f32
    %96 = vector.broadcast %cst_23 : f32 to vector<2x32xf32>
    %97 = vector.shape_cast %89 : vector<2x1xi1> to vector<2x1xi1>
    %98 = vector.broadcast %97 : vector<2x1xi1> to vector<2x32xi1>
    %99 = arith.select %98, %86, %96 : vector<2x32xi1>, vector<2x32xf32>
    %100 = arith.index_cast %c1_i32 : i32 to index
    %c0_24 = arith.constant 0 : index
    %c0_25 = arith.constant 0 : index
    %101 = vector.load %arg7[%100, %c0_24, %c0_25] : memref<8x2x32xf32, #tpu.memory_space<vmem>>, vector<1x2x32xf32>
    %102 = vector.shape_cast %101 : vector<1x2x32xf32> to vector<2x32xf32>
    %103 = vector.shape_cast %99 : vector<2x32xf32> to vector<1x2x32xf32>
    tpu.vector_store %arg7[%100, %c0_24, %c0_25], %103 {strides = array<i32>} : memref<8x2x32xf32, #tpu.memory_space<vmem>>, vector<1x2x32xf32>,
    %c2_i32 = arith.constant 2 : i32
    %104 = arith.index_cast %c2_i32 : i32 to index
    %c0_26 = arith.constant 0 : index
    %c0_27 = arith.constant 0 : index
    %105 = vector.load %arg2[%104, %c0_26, %c0_27] : memref<8x2x128xf32, #tpu.memory_space<vmem>>, vector<1x2x128xf32>
    %106 = vector.shape_cast %105 : vector<1x2x128xf32> to vector<2x128xf32>
    %107 = arith.truncf %95 : vector<2x32xf32> to vector<2x32xbf16>
    %cst_28 = arith.constant dense<0.000000e+00> : vector<2x128xf32>
    %108 = tpu.matmul %107, %3, %cst_28 {dimension_numbers = #tpu.dot_dimension_numbers<[1], [0], [0], [1], [0, 0, 1, 1], [], []>} : vector<2x32xbf16>, vector<32x128xbf16>, vector<2x128xf32> -> vector<2x128xf32>
    %109 = arith.addf %106, %108 : vector<2x128xf32>
    %110 = vector.extract_strided_slice %109 {offsets = [0, 0], sizes = [2, 32], strides = [1, 1]} : vector<2x128xf32> to vector<2x32xf32>
    %111 = arith.negf %110 : vector<2x32xf32>
    %112 = math.exp %111 : vector<2x32xf32>
    %cst_29 = arith.constant 1.000000e+00 : f32
    %113 = vector.broadcast %cst_29 : f32 to vector<2x32xf32>
    %114 = arith.addf %113, %112 : vector<2x32xf32>
    %115 = arith.divf %113, %114 : vector<2x32xf32>
    %116 = vector.extract_strided_slice %109 {offsets = [0, 32], sizes = [2, 32], strides = [1, 1]} : vector<2x128xf32> to vector<2x32xf32>
    %117 = arith.negf %116 : vector<2x32xf32>
    %118 = math.exp %117 : vector<2x32xf32>
    %cst_30 = arith.constant 1.000000e+00 : f32
    %119 = vector.broadcast %cst_30 : f32 to vector<2x32xf32>
    %120 = arith.addf %119, %118 : vector<2x32xf32>
    %121 = arith.divf %119, %120 : vector<2x32xf32>
    %122 = vector.extract_strided_slice %109 {offsets = [0, 64], sizes = [2, 32], strides = [1, 1]} : vector<2x128xf32> to vector<2x32xf32>
    %123 = math.tanh %122 : vector<2x32xf32>
    %124 = vector.extract_strided_slice %109 {offsets = [0, 96], sizes = [2, 32], strides = [1, 1]} : vector<2x128xf32> to vector<2x32xf32>
    %125 = arith.negf %124 : vector<2x32xf32>
    %126 = math.exp %125 : vector<2x32xf32>
    %cst_31 = arith.constant 1.000000e+00 : f32
    %127 = vector.broadcast %cst_31 : f32 to vector<2x32xf32>
    %128 = arith.addf %127, %126 : vector<2x32xf32>
    %129 = arith.divf %127, %128 : vector<2x32xf32>
    %130 = arith.mulf %121, %92 : vector<2x32xf32>
    %131 = arith.mulf %115, %123 : vector<2x32xf32>
    %132 = arith.addf %130, %131 : vector<2x32xf32>
    %133 = math.tanh %132 : vector<2x32xf32>
    %134 = arith.mulf %129, %133 : vector<2x32xf32>
    %135 = arith.addi %5, %c2_i32 : i32
    %136 = vector.broadcast %135 : i32 to vector<2x1xi32>
    %137 = arith.cmpi sgt, %4, %136 : vector<2x1xi32>
    %138 = vector.shape_cast %137 : vector<2x1xi1> to vector<2x1xi1>
    %139 = vector.broadcast %138 : vector<2x1xi1> to vector<2x32xi1>
    %140 = arith.select %139, %132, %92 : vector<2x32xi1>, vector<2x32xf32>
    %141 = vector.shape_cast %137 : vector<2x1xi1> to vector<2x1xi1>
    %142 = vector.broadcast %141 : vector<2x1xi1> to vector<2x32xi1>
    %143 = arith.select %142, %134, %95 : vector<2x32xi1>, vector<2x32xf32>
    %cst_32 = arith.constant 0.000000e+00 : f32
    %144 = vector.broadcast %cst_32 : f32 to vector<2x32xf32>
    %145 = vector.shape_cast %137 : vector<2x1xi1> to vector<2x1xi1>
    %146 = vector.broadcast %145 : vector<2x1xi1> to vector<2x32xi1>
    %147 = arith.select %146, %134, %144 : vector<2x32xi1>, vector<2x32xf32>
    %148 = arith.index_cast %c2_i32 : i32 to index
    %c0_33 = arith.constant 0 : index
    %c0_34 = arith.constant 0 : index
    %149 = vector.load %arg7[%148, %c0_33, %c0_34] : memref<8x2x32xf32, #tpu.memory_space<vmem>>, vector<1x2x32xf32>
    %150 = vector.shape_cast %149 : vector<1x2x32xf32> to vector<2x32xf32>
    %151 = vector.shape_cast %147 : vector<2x32xf32> to vector<1x2x32xf32>
    tpu.vector_store %arg7[%148, %c0_33, %c0_34], %151 {strides = array<i32>} : memref<8x2x32xf32, #tpu.memory_space<vmem>>, vector<1x2x32xf32>,
    %c3_i32 = arith.constant 3 : i32
    %152 = arith.index_cast %c3_i32 : i32 to index
    %c0_35 = arith.constant 0 : index
    %c0_36 = arith.constant 0 : index
    %153 = vector.load %arg2[%152, %c0_35, %c0_36] : memref<8x2x128xf32, #tpu.memory_space<vmem>>, vector<1x2x128xf32>
    %154 = vector.shape_cast %153 : vector<1x2x128xf32> to vector<2x128xf32>
    %155 = arith.truncf %143 : vector<2x32xf32> to vector<2x32xbf16>
    %cst_37 = arith.constant dense<0.000000e+00> : vector<2x128xf32>
    %156 = tpu.matmul %155, %3, %cst_37 {dimension_numbers = #tpu.dot_dimension_numbers<[1], [0], [0], [1], [0, 0, 1, 1], [], []>} : vector<2x32xbf16>, vector<32x128xbf16>, vector<2x128xf32> -> vector<2x128xf32>
    %157 = arith.addf %154, %156 : vector<2x128xf32>
    %158 = vector.extract_strided_slice %157 {offsets = [0, 0], sizes = [2, 32], strides = [1, 1]} : vector<2x128xf32> to vector<2x32xf32>
    %159 = arith.negf %158 : vector<2x32xf32>
    %160 = math.exp %159 : vector<2x32xf32>
    %cst_38 = arith.constant 1.000000e+00 : f32
    %161 = vector.broadcast %cst_38 : f32 to vector<2x32xf32>
    %162 = arith.addf %161, %160 : vector<2x32xf32>
    %163 = arith.divf %161, %162 : vector<2x32xf32>
    %164 = vector.extract_strided_slice %157 {offsets = [0, 32], sizes = [2, 32], strides = [1, 1]} : vector<2x128xf32> to vector<2x32xf32>
    %165 = arith.negf %164 : vector<2x32xf32>
    %166 = math.exp %165 : vector<2x32xf32>
    %cst_39 = arith.constant 1.000000e+00 : f32
    %167 = vector.broadcast %cst_39 : f32 to vector<2x32xf32>
    %168 = arith.addf %167, %166 : vector<2x32xf32>
    %169 = arith.divf %167, %168 : vector<2x32xf32>
    %170 = vector.extract_strided_slice %157 {offsets = [0, 64], sizes = [2, 32], strides = [1, 1]} : vector<2x128xf32> to vector<2x32xf32>
    %171 = math.tanh %170 : vector<2x32xf32>
    %172 = vector.extract_strided_slice %157 {offsets = [0, 96], sizes = [2, 32], strides = [1, 1]} : vector<2x128xf32> to vector<2x32xf32>
    %173 = arith.negf %172 : vector<2x32xf32>
    %174 = math.exp %173 : vector<2x32xf32>
    %cst_40 = arith.constant 1.000000e+00 : f32
    %175 = vector.broadcast %cst_40 : f32 to vector<2x32xf32>
    %176 = arith.addf %175, %174 : vector<2x32xf32>
    %177 = arith.divf %175, %176 : vector<2x32xf32>
    %178 = arith.mulf %169, %140 : vector<2x32xf32>
    %179 = arith.mulf %163, %171 : vector<2x32xf32>
    %180 = arith.addf %178, %179 : vector<2x32xf32>
    %181 = math.tanh %180 : vector<2x32xf32>
    %182 = arith.mulf %177, %181 : vector<2x32xf32>
    %183 = arith.addi %5, %c3_i32 : i32
    %184 = vector.broadcast %183 : i32 to vector<2x1xi32>
    %185 = arith.cmpi sgt, %4, %184 : vector<2x1xi32>
    %186 = vector.shape_cast %185 : vector<2x1xi1> to vector<2x1xi1>
    %187 = vector.broadcast %186 : vector<2x1xi1> to vector<2x32xi1>
    %188 = arith.select %187, %180, %140 : vector<2x32xi1>, vector<2x32xf32>
    %189 = vector.shape_cast %185 : vector<2x1xi1> to vector<2x1xi1>
    %190 = vector.broadcast %189 : vector<2x1xi1> to vector<2x32xi1>
    %191 = arith.select %190, %182, %143 : vector<2x32xi1>, vector<2x32xf32>
    %cst_41 = arith.constant 0.000000e+00 : f32
    %192 = vector.broadcast %cst_41 : f32 to vector<2x32xf32>
    %193 = vector.shape_cast %185 : vector<2x1xi1> to vector<2x1xi1>
    %194 = vector.broadcast %193 : vector<2x1xi1> to vector<2x32xi1>
    %195 = arith.select %194, %182, %192 : vector<2x32xi1>, vector<2x32xf32>
    %196 = arith.index_cast %c3_i32 : i32 to index
    %c0_42 = arith.constant 0 : index
    %c0_43 = arith.constant 0 : index
    %197 = vector.load %arg7[%196, %c0_42, %c0_43] : memref<8x2x32xf32, #tpu.memory_space<vmem>>, vector<1x2x32xf32>
    %198 = vector.shape_cast %197 : vector<1x2x32xf32> to vector<2x32xf32>
    %199 = vector.shape_cast %195 : vector<2x32xf32> to vector<1x2x32xf32>
    tpu.vector_store %arg7[%196, %c0_42, %c0_43], %199 {strides = array<i32>} : memref<8x2x32xf32, #tpu.memory_space<vmem>>, vector<1x2x32xf32>,
    %c4_i32 = arith.constant 4 : i32
    %200 = arith.index_cast %c4_i32 : i32 to index
    %c0_44 = arith.constant 0 : index
    %c0_45 = arith.constant 0 : index
    %201 = vector.load %arg2[%200, %c0_44, %c0_45] : memref<8x2x128xf32, #tpu.memory_space<vmem>>, vector<1x2x128xf32>
    %202 = vector.shape_cast %201 : vector<1x2x128xf32> to vector<2x128xf32>
    %203 = arith.truncf %191 : vector<2x32xf32> to vector<2x32xbf16>
    %cst_46 = arith.constant dense<0.000000e+00> : vector<2x128xf32>
    %204 = tpu.matmul %203, %3, %cst_46 {dimension_numbers = #tpu.dot_dimension_numbers<[1], [0], [0], [1], [0, 0, 1, 1], [], []>} : vector<2x32xbf16>, vector<32x128xbf16>, vector<2x128xf32> -> vector<2x128xf32>
    %205 = arith.addf %202, %204 : vector<2x128xf32>
    %206 = vector.extract_strided_slice %205 {offsets = [0, 0], sizes = [2, 32], strides = [1, 1]} : vector<2x128xf32> to vector<2x32xf32>
    %207 = arith.negf %206 : vector<2x32xf32>
    %208 = math.exp %207 : vector<2x32xf32>
    %cst_47 = arith.constant 1.000000e+00 : f32
    %209 = vector.broadcast %cst_47 : f32 to vector<2x32xf32>
    %210 = arith.addf %209, %208 : vector<2x32xf32>
    %211 = arith.divf %209, %210 : vector<2x32xf32>
    %212 = vector.extract_strided_slice %205 {offsets = [0, 32], sizes = [2, 32], strides = [1, 1]} : vector<2x128xf32> to vector<2x32xf32>
    %213 = arith.negf %212 : vector<2x32xf32>
    %214 = math.exp %213 : vector<2x32xf32>
    %cst_48 = arith.constant 1.000000e+00 : f32
    %215 = vector.broadcast %cst_48 : f32 to vector<2x32xf32>
    %216 = arith.addf %215, %214 : vector<2x32xf32>
    %217 = arith.divf %215, %216 : vector<2x32xf32>
    %218 = vector.extract_strided_slice %205 {offsets = [0, 64], sizes = [2, 32], strides = [1, 1]} : vector<2x128xf32> to vector<2x32xf32>
    %219 = math.tanh %218 : vector<2x32xf32>
    %220 = vector.extract_strided_slice %205 {offsets = [0, 96], sizes = [2, 32], strides = [1, 1]} : vector<2x128xf32> to vector<2x32xf32>
    %221 = arith.negf %220 : vector<2x32xf32>
    %222 = math.exp %221 : vector<2x32xf32>
    %cst_49 = arith.constant 1.000000e+00 : f32
    %223 = vector.broadcast %cst_49 : f32 to vector<2x32xf32>
    %224 = arith.addf %223, %222 : vector<2x32xf32>
    %225 = arith.divf %223, %224 : vector<2x32xf32>
    %226 = arith.mulf %217, %188 : vector<2x32xf32>
    %227 = arith.mulf %211, %219 : vector<2x32xf32>
    %228 = arith.addf %226, %227 : vector<2x32xf32>
    %229 = math.tanh %228 : vector<2x32xf32>
    %230 = arith.mulf %225, %229 : vector<2x32xf32>
    %231 = arith.addi %5, %c4_i32 : i32
    %232 = vector.broadcast %231 : i32 to vector<2x1xi32>
    %233 = arith.cmpi sgt, %4, %232 : vector<2x1xi32>
    %234 = vector.shape_cast %233 : vector<2x1xi1> to vector<2x1xi1>
    %235 = vector.broadcast %234 : vector<2x1xi1> to vector<2x32xi1>
    %236 = arith.select %235, %228, %188 : vector<2x32xi1>, vector<2x32xf32>
    %237 = vector.shape_cast %233 : vector<2x1xi1> to vector<2x1xi1>
    %238 = vector.broadcast %237 : vector<2x1xi1> to vector<2x32xi1>
    %239 = arith.select %238, %230, %191 : vector<2x32xi1>, vector<2x32xf32>
    %cst_50 = arith.constant 0.000000e+00 : f32
    %240 = vector.broadcast %cst_50 : f32 to vector<2x32xf32>
    %241 = vector.shape_cast %233 : vector<2x1xi1> to vector<2x1xi1>
    %242 = vector.broadcast %241 : vector<2x1xi1> to vector<2x32xi1>
    %243 = arith.select %242, %230, %240 : vector<2x32xi1>, vector<2x32xf32>
    %244 = arith.index_cast %c4_i32 : i32 to index
    %c0_51 = arith.constant 0 : index
    %c0_52 = arith.constant 0 : index
    %245 = vector.load %arg7[%244, %c0_51, %c0_52] : memref<8x2x32xf32, #tpu.memory_space<vmem>>, vector<1x2x32xf32>
    %246 = vector.shape_cast %245 : vector<1x2x32xf32> to vector<2x32xf32>
    %247 = vector.shape_cast %243 : vector<2x32xf32> to vector<1x2x32xf32>
    tpu.vector_store %arg7[%244, %c0_51, %c0_52], %247 {strides = array<i32>} : memref<8x2x32xf32, #tpu.memory_space<vmem>>, vector<1x2x32xf32>,
    %c5_i32 = arith.constant 5 : i32
    %248 = arith.index_cast %c5_i32 : i32 to index
    %c0_53 = arith.constant 0 : index
    %c0_54 = arith.constant 0 : index
    %249 = vector.load %arg2[%248, %c0_53, %c0_54] : memref<8x2x128xf32, #tpu.memory_space<vmem>>, vector<1x2x128xf32>
    %250 = vector.shape_cast %249 : vector<1x2x128xf32> to vector<2x128xf32>
    %251 = arith.truncf %239 : vector<2x32xf32> to vector<2x32xbf16>
    %cst_55 = arith.constant dense<0.000000e+00> : vector<2x128xf32>
    %252 = tpu.matmul %251, %3, %cst_55 {dimension_numbers = #tpu.dot_dimension_numbers<[1], [0], [0], [1], [0, 0, 1, 1], [], []>} : vector<2x32xbf16>, vector<32x128xbf16>, vector<2x128xf32> -> vector<2x128xf32>
    %253 = arith.addf %250, %252 : vector<2x128xf32>
    %254 = vector.extract_strided_slice %253 {offsets = [0, 0], sizes = [2, 32], strides = [1, 1]} : vector<2x128xf32> to vector<2x32xf32>
    %255 = arith.negf %254 : vector<2x32xf32>
    %256 = math.exp %255 : vector<2x32xf32>
    %cst_56 = arith.constant 1.000000e+00 : f32
    %257 = vector.broadcast %cst_56 : f32 to vector<2x32xf32>
    %258 = arith.addf %257, %256 : vector<2x32xf32>
    %259 = arith.divf %257, %258 : vector<2x32xf32>
    %260 = vector.extract_strided_slice %253 {offsets = [0, 32], sizes = [2, 32], strides = [1, 1]} : vector<2x128xf32> to vector<2x32xf32>
    %261 = arith.negf %260 : vector<2x32xf32>
    %262 = math.exp %261 : vector<2x32xf32>
    %cst_57 = arith.constant 1.000000e+00 : f32
    %263 = vector.broadcast %cst_57 : f32 to vector<2x32xf32>
    %264 = arith.addf %263, %262 : vector<2x32xf32>
    %265 = arith.divf %263, %264 : vector<2x32xf32>
    %266 = vector.extract_strided_slice %253 {offsets = [0, 64], sizes = [2, 32], strides = [1, 1]} : vector<2x128xf32> to vector<2x32xf32>
    %267 = math.tanh %266 : vector<2x32xf32>
    %268 = vector.extract_strided_slice %253 {offsets = [0, 96], sizes = [2, 32], strides = [1, 1]} : vector<2x128xf32> to vector<2x32xf32>
    %269 = arith.negf %268 : vector<2x32xf32>
    %270 = math.exp %269 : vector<2x32xf32>
    %cst_58 = arith.constant 1.000000e+00 : f32
    %271 = vector.broadcast %cst_58 : f32 to vector<2x32xf32>
    %272 = arith.addf %271, %270 : vector<2x32xf32>
    %273 = arith.divf %271, %272 : vector<2x32xf32>
    %274 = arith.mulf %265, %236 : vector<2x32xf32>
    %275 = arith.mulf %259, %267 : vector<2x32xf32>
    %276 = arith.addf %274, %275 : vector<2x32xf32>
    %277 = math.tanh %276 : vector<2x32xf32>
    %278 = arith.mulf %273, %277 : vector<2x32xf32>
    %279 = arith.addi %5, %c5_i32 : i32
    %280 = vector.broadcast %279 : i32 to vector<2x1xi32>
    %281 = arith.cmpi sgt, %4, %280 : vector<2x1xi32>
    %282 = vector.shape_cast %281 : vector<2x1xi1> to vector<2x1xi1>
    %283 = vector.broadcast %282 : vector<2x1xi1> to vector<2x32xi1>
    %284 = arith.select %283, %276, %236 : vector<2x32xi1>, vector<2x32xf32>
    %285 = vector.shape_cast %281 : vector<2x1xi1> to vector<2x1xi1>
    %286 = vector.broadcast %285 : vector<2x1xi1> to vector<2x32xi1>
    %287 = arith.select %286, %278, %239 : vector<2x32xi1>, vector<2x32xf32>
    %cst_59 = arith.constant 0.000000e+00 : f32
    %288 = vector.broadcast %cst_59 : f32 to vector<2x32xf32>
    %289 = vector.shape_cast %281 : vector<2x1xi1> to vector<2x1xi1>
    %290 = vector.broadcast %289 : vector<2x1xi1> to vector<2x32xi1>
    %291 = arith.select %290, %278, %288 : vector<2x32xi1>, vector<2x32xf32>
    %292 = arith.index_cast %c5_i32 : i32 to index
    %c0_60 = arith.constant 0 : index
    %c0_61 = arith.constant 0 : index
    %293 = vector.load %arg7[%292, %c0_60, %c0_61] : memref<8x2x32xf32, #tpu.memory_space<vmem>>, vector<1x2x32xf32>
    %294 = vector.shape_cast %293 : vector<1x2x32xf32> to vector<2x32xf32>
    %295 = vector.shape_cast %291 : vector<2x32xf32> to vector<1x2x32xf32>
    tpu.vector_store %arg7[%292, %c0_60, %c0_61], %295 {strides = array<i32>} : memref<8x2x32xf32, #tpu.memory_space<vmem>>, vector<1x2x32xf32>,
    %c6_i32 = arith.constant 6 : i32
    %296 = arith.index_cast %c6_i32 : i32 to index
    %c0_62 = arith.constant 0 : index
    %c0_63 = arith.constant 0 : index
    %297 = vector.load %arg2[%296, %c0_62, %c0_63] : memref<8x2x128xf32, #tpu.memory_space<vmem>>, vector<1x2x128xf32>
    %298 = vector.shape_cast %297 : vector<1x2x128xf32> to vector<2x128xf32>
    %299 = arith.truncf %287 : vector<2x32xf32> to vector<2x32xbf16>
    %cst_64 = arith.constant dense<0.000000e+00> : vector<2x128xf32>
    %300 = tpu.matmul %299, %3, %cst_64 {dimension_numbers = #tpu.dot_dimension_numbers<[1], [0], [0], [1], [0, 0, 1, 1], [], []>} : vector<2x32xbf16>, vector<32x128xbf16>, vector<2x128xf32> -> vector<2x128xf32>
    %301 = arith.addf %298, %300 : vector<2x128xf32>
    %302 = vector.extract_strided_slice %301 {offsets = [0, 0], sizes = [2, 32], strides = [1, 1]} : vector<2x128xf32> to vector<2x32xf32>
    %303 = arith.negf %302 : vector<2x32xf32>
    %304 = math.exp %303 : vector<2x32xf32>
    %cst_65 = arith.constant 1.000000e+00 : f32
    %305 = vector.broadcast %cst_65 : f32 to vector<2x32xf32>
    %306 = arith.addf %305, %304 : vector<2x32xf32>
    %307 = arith.divf %305, %306 : vector<2x32xf32>
    %308 = vector.extract_strided_slice %301 {offsets = [0, 32], sizes = [2, 32], strides = [1, 1]} : vector<2x128xf32> to vector<2x32xf32>
    %309 = arith.negf %308 : vector<2x32xf32>
    %310 = math.exp %309 : vector<2x32xf32>
    %cst_66 = arith.constant 1.000000e+00 : f32
    %311 = vector.broadcast %cst_66 : f32 to vector<2x32xf32>
    %312 = arith.addf %311, %310 : vector<2x32xf32>
    %313 = arith.divf %311, %312 : vector<2x32xf32>
    %314 = vector.extract_strided_slice %301 {offsets = [0, 64], sizes = [2, 32], strides = [1, 1]} : vector<2x128xf32> to vector<2x32xf32>
    %315 = math.tanh %314 : vector<2x32xf32>
    %316 = vector.extract_strided_slice %301 {offsets = [0, 96], sizes = [2, 32], strides = [1, 1]} : vector<2x128xf32> to vector<2x32xf32>
    %317 = arith.negf %316 : vector<2x32xf32>
    %318 = math.exp %317 : vector<2x32xf32>
    %cst_67 = arith.constant 1.000000e+00 : f32
    %319 = vector.broadcast %cst_67 : f32 to vector<2x32xf32>
    %320 = arith.addf %319, %318 : vector<2x32xf32>
    %321 = arith.divf %319, %320 : vector<2x32xf32>
    %322 = arith.mulf %313, %284 : vector<2x32xf32>
    %323 = arith.mulf %307, %315 : vector<2x32xf32>
    %324 = arith.addf %322, %323 : vector<2x32xf32>
    %325 = math.tanh %324 : vector<2x32xf32>
    %326 = arith.mulf %321, %325 : vector<2x32xf32>
    %327 = arith.addi %5, %c6_i32 : i32
    %328 = vector.broadcast %327 : i32 to vector<2x1xi32>
    %329 = arith.cmpi sgt, %4, %328 : vector<2x1xi32>
    %330 = vector.shape_cast %329 : vector<2x1xi1> to vector<2x1xi1>
    %331 = vector.broadcast %330 : vector<2x1xi1> to vector<2x32xi1>
    %332 = arith.select %331, %324, %284 : vector<2x32xi1>, vector<2x32xf32>
    %333 = vector.shape_cast %329 : vector<2x1xi1> to vector<2x1xi1>
    %334 = vector.broadcast %333 : vector<2x1xi1> to vector<2x32xi1>
    %335 = arith.select %334, %326, %287 : vector<2x32xi1>, vector<2x32xf32>
    %cst_68 = arith.constant 0.000000e+00 : f32
    %336 = vector.broadcast %cst_68 : f32 to vector<2x32xf32>
    %337 = vector.shape_cast %329 : vector<2x1xi1> to vector<2x1xi1>
    %338 = vector.broadcast %337 : vector<2x1xi1> to vector<2x32xi1>
    %339 = arith.select %338, %326, %336 : vector<2x32xi1>, vector<2x32xf32>
    %340 = arith.index_cast %c6_i32 : i32 to index
    %c0_69 = arith.constant 0 : index
    %c0_70 = arith.constant 0 : index
    %341 = vector.load %arg7[%340, %c0_69, %c0_70] : memref<8x2x32xf32, #tpu.memory_space<vmem>>, vector<1x2x32xf32>
    %342 = vector.shape_cast %341 : vector<1x2x32xf32> to vector<2x32xf32>
    %343 = vector.shape_cast %339 : vector<2x32xf32> to vector<1x2x32xf32>
    tpu.vector_store %arg7[%340, %c0_69, %c0_70], %343 {strides = array<i32>} : memref<8x2x32xf32, #tpu.memory_space<vmem>>, vector<1x2x32xf32>,
    %c7_i32 = arith.constant 7 : i32
    %344 = arith.index_cast %c7_i32 : i32 to index
    %c0_71 = arith.constant 0 : index
    %c0_72 = arith.constant 0 : index
    %345 = vector.load %arg2[%344, %c0_71, %c0_72] : memref<8x2x128xf32, #tpu.memory_space<vmem>>, vector<1x2x128xf32>
    %346 = vector.shape_cast %345 : vector<1x2x128xf32> to vector<2x128xf32>
    %347 = arith.truncf %335 : vector<2x32xf32> to vector<2x32xbf16>
    %cst_73 = arith.constant dense<0.000000e+00> : vector<2x128xf32>
    %348 = tpu.matmul %347, %3, %cst_73 {dimension_numbers = #tpu.dot_dimension_numbers<[1], [0], [0], [1], [0, 0, 1, 1], [], []>} : vector<2x32xbf16>, vector<32x128xbf16>, vector<2x128xf32> -> vector<2x128xf32>
    %349 = arith.addf %346, %348 : vector<2x128xf32>
    %350 = vector.extract_strided_slice %349 {offsets = [0, 0], sizes = [2, 32], strides = [1, 1]} : vector<2x128xf32> to vector<2x32xf32>
    %351 = arith.negf %350 : vector<2x32xf32>
    %352 = math.exp %351 : vector<2x32xf32>
    %cst_74 = arith.constant 1.000000e+00 : f32
    %353 = vector.broadcast %cst_74 : f32 to vector<2x32xf32>
    %354 = arith.addf %353, %352 : vector<2x32xf32>
    %355 = arith.divf %353, %354 : vector<2x32xf32>
    %356 = vector.extract_strided_slice %349 {offsets = [0, 32], sizes = [2, 32], strides = [1, 1]} : vector<2x128xf32> to vector<2x32xf32>
    %357 = arith.negf %356 : vector<2x32xf32>
    %358 = math.exp %357 : vector<2x32xf32>
    %cst_75 = arith.constant 1.000000e+00 : f32
    %359 = vector.broadcast %cst_75 : f32 to vector<2x32xf32>
    %360 = arith.addf %359, %358 : vector<2x32xf32>
    %361 = arith.divf %359, %360 : vector<2x32xf32>
    %362 = vector.extract_strided_slice %349 {offsets = [0, 64], sizes = [2, 32], strides = [1, 1]} : vector<2x128xf32> to vector<2x32xf32>
    %363 = math.tanh %362 : vector<2x32xf32>
    %364 = vector.extract_strided_slice %349 {offsets = [0, 96], sizes = [2, 32], strides = [1, 1]} : vector<2x128xf32> to vector<2x32xf32>
    %365 = arith.negf %364 : vector<2x32xf32>
    %366 = math.exp %365 : vector<2x32xf32>
    %cst_76 = arith.constant 1.000000e+00 : f32
    %367 = vector.broadcast %cst_76 : f32 to vector<2x32xf32>
    %368 = arith.addf %367, %366 : vector<2x32xf32>
    %369 = arith.divf %367, %368 : vector<2x32xf32>
    %370 = arith.mulf %361, %332 : vector<2x32xf32>
    %371 = arith.mulf %355, %363 : vector<2x32xf32>
    %372 = arith.addf %370, %371 : vector<2x32xf32>
    %373 = math.tanh %372 : vector<2x32xf32>
    %374 = arith.mulf %369, %373 : vector<2x32xf32>
    %375 = arith.addi %5, %c7_i32 : i32
    %376 = vector.broadcast %375 : i32 to vector<2x1xi32>
    %377 = arith.cmpi sgt, %4, %376 : vector<2x1xi32>
    %378 = vector.shape_cast %377 : vector<2x1xi1> to vector<2x1xi1>
    %379 = vector.broadcast %378 : vector<2x1xi1> to vector<2x32xi1>
    %380 = arith.select %379, %372, %332 : vector<2x32xi1>, vector<2x32xf32>
    %381 = vector.shape_cast %377 : vector<2x1xi1> to vector<2x1xi1>
    %382 = vector.broadcast %381 : vector<2x1xi1> to vector<2x32xi1>
    %383 = arith.select %382, %374, %335 : vector<2x32xi1>, vector<2x32xf32>
    %cst_77 = arith.constant 0.000000e+00 : f32
    %384 = vector.broadcast %cst_77 : f32 to vector<2x32xf32>
    %385 = vector.shape_cast %377 : vector<2x1xi1> to vector<2x1xi1>
    %386 = vector.broadcast %385 : vector<2x1xi1> to vector<2x32xi1>
    %387 = arith.select %386, %374, %384 : vector<2x32xi1>, vector<2x32xf32>
    %388 = arith.index_cast %c7_i32 : i32 to index
    %c0_78 = arith.constant 0 : index
    %c0_79 = arith.constant 0 : index
    %389 = vector.load %arg7[%388, %c0_78, %c0_79] : memref<8x2x32xf32, #tpu.memory_space<vmem>>, vector<1x2x32xf32>
    %390 = vector.shape_cast %389 : vector<1x2x32xf32> to vector<2x32xf32>
    %391 = vector.shape_cast %387 : vector<2x32xf32> to vector<1x2x32xf32>
    tpu.vector_store %arg7[%388, %c0_78, %c0_79], %391 {strides = array<i32>} : memref<8x2x32xf32, #tpu.memory_space<vmem>>, vector<1x2x32xf32>,
    %c8_i32_80 = arith.constant 8 : i32
    %c0_81 = arith.constant 0 : index
    %c0_82 = arith.constant 0 : index
    %392 = vector.load %arg10[%c0_81, %c0_82] : memref<2x32xf32, #tpu.memory_space<vmem>>, vector<2x32xf32>
    tpu.vector_store %arg10[%c0_81, %c0_82], %383 {strides = array<i32>} : memref<2x32xf32, #tpu.memory_space<vmem>>, vector<2x32xf32>,
    %c0_83 = arith.constant 0 : index
    %c0_84 = arith.constant 0 : index
    %393 = vector.load %arg11[%c0_83, %c0_84] : memref<2x32xf32, #tpu.memory_space<vmem>>, vector<2x32xf32>
    tpu.vector_store %arg11[%c0_83, %c0_84], %380 {strides = array<i32>} : memref<2x32xf32, #tpu.memory_space<vmem>>, vector<2x32xf32>,
    %c0_i32_85 = arith.constant 0 : i32
    %394 = arith.cmpi eq, %arg1, %c0_i32_85 : i32
    %395 = arith.extui %394 : i1 to i32
    %c0_i32_86 = arith.constant 0 : i32
    %396 = arith.cmpi ne, %395, %c0_i32_86 : i32
    scf.if %396 {
      %c0_87 = arith.constant 0 : index
      %c0_88 = arith.constant 0 : index
      %397 = vector.load %arg8[%c0_87, %c0_88] : memref<2x32xf32, #tpu.memory_space<vmem>>, vector<2x32xf32>
      tpu.vector_store %arg8[%c0_87, %c0_88], %383 {strides = array<i32>} : memref<2x32xf32, #tpu.memory_space<vmem>>, vector<2x32xf32>,
      %c0_89 = arith.constant 0 : index
      %c0_90 = arith.constant 0 : index
      %398 = vector.load %arg9[%c0_89, %c0_90] : memref<2x32xf32, #tpu.memory_space<vmem>>, vector<2x32xf32>
      tpu.vector_store %arg9[%c0_89, %c0_90], %380 {strides = array<i32>} : memref<2x32xf32, #tpu.memory_space<vmem>>, vector<2x32xf32>,
    } else {
    }
    return
  }
  func.func @transform_0(%arg0: i32, %arg1: i32) -> (i32, i32, i32) {
    %c0_i32 = arith.constant 0 : i32
    %c0_i32_0 = arith.constant 0 : i32
    return %arg1, %arg0, %c0_i32 : i32, i32, i32
  }
  func.func @transform_1(%arg0: i32, %arg1: i32) -> (i32, i32) {
    %c0_i32 = arith.constant 0 : i32
    %c0_i32_0 = arith.constant 0 : i32
    return %arg0, %c0_i32 : i32, i32
  }
  func.func @transform_2(%arg0: i32, %arg1: i32) -> (i32, i32) {
    %c0_i32 = arith.constant 0 : i32
    %c0_i32_0 = arith.constant 0 : i32
    return %arg0, %c0_i32 : i32, i32
  }
  func.func @transform_3(%arg0: i32, %arg1: i32) -> (i32, i32) {
    %c0_i32 = arith.constant 0 : i32
    %c0_i32_0 = arith.constant 0 : i32
    return %arg0, %c0_i32 : i32, i32
  }
  func.func @transform_4(%arg0: i32, %arg1: i32) -> (i32, i32) {
    %c0_i32 = arith.constant 0 : i32
    %c0_i32_0 = arith.constant 0 : i32
    %c0_i32_1 = arith.constant 0 : i32
    return %c0_i32, %c0_i32_0 : i32, i32
  }
  func.func @transform_5(%arg0: i32, %arg1: i32) -> (i32, i32, i32) {
    %c0_i32 = arith.constant 0 : i32
    %c0_i32_0 = arith.constant 0 : i32
    return %arg1, %arg0, %c0_i32 : i32, i32, i32
  }
  func.func @transform_6(%arg0: i32, %arg1: i32) -> (i32, i32) {
    %c0_i32 = arith.constant 0 : i32
    %c0_i32_0 = arith.constant 0 : i32
    return %arg0, %c0_i32 : i32, i32
  }
  func.func @transform_7(%arg0: i32, %arg1: i32) -> (i32, i32) {
    %c0_i32 = arith.constant 0 : i32
    %c0_i32_0 = arith.constant 0 : i32
    return %arg0, %c0_i32 : i32, i32
  }
}

</mosaic_0001>

<llo_original>
// kernel: lm_lstm_forward.3
$region0: #{lm_lstm_forward.3}
  #allocation0 [shape = 'u32[]', space=smem, size = 0x4, offset = 0x4, fixed_abs, tag = 'smem constant byte address 0x4 - core index']
  #allocation1 [shape = 'u32[144,128]{1,0:T(1,128)}', space=vmem, size = 0x12000, scoped, tag = 'internal scratch']
  %s0 = inlined_call_operand.hbm [shape: bf16[16,32], index: 0, kind: input, shape index: {}]
  %s1 = inlined_call_operand.hbm [shape: bf16[32,128], index: 1, kind: input, shape index: {}]
  %s2 = inlined_call_operand.hbm [shape: f32[1,128], index: 2, kind: input, shape index: {}]
  %s3 = inlined_call_operand.hbm [shape: f32[16,128], index: 3, kind: output, shape index: {}]
  %s4 = sld [smem:[#allocation0]]
  $region34: #{lm_lstm_forward.3} parent=0
    _
  %s6 = ssub.s32 1, %s4
  %s7 = scalar_select 0, %s6, %s4
  $region1: #{lm_lstm_forward.3} parent=0
    #allocation2 [shape = 'u8[4096]{0}', space=vmem, size = 0x1000, scoped, tag = 'input window, operand 0, single buffered']
    #allocation3 [shape = 's32[1]{0}', space=sflag, size = 0x4, scoped, tag = 'scoped memory for lm_lstm_forward.3']
    #allocation4 [shape = 's32[1]{0}', space=sflag, size = 0x4, scoped, tag = 'scoped memory for lm_lstm_forward.3']
    #allocation5 [shape = 'u8[8192]{0}', space=vmem, size = 0x2000, scoped, tag = 'input window, operand 1, single buffered']
    #allocation6 [shape = 's32[1]{0}', space=sflag, size = 0x4, scoped, tag = 'scoped memory for lm_lstm_forward.3']
    #allocation7 [shape = 'u8[512]{0}', space=vmem, size = 0x400, scoped, tag = 'input window, operand 2, single buffered']
    #allocation8 [shape = 'u8[8192]{0}', space=vmem, size = 0x2000, scoped, tag = 'output window, operand 0, single buffered']
    %8 = vsyncpa [#allocation3], 0
    %9 = vsyncpa [#allocation6], 0
    %10 = vsyncpa [#allocation4], 0
    // Predicated region
    $region2: #{lm_lstm_forward.3} parent=1 // pred_check
      _
    $region3: #{lm_lstm_forward.3} parent=1 // pred_check_branch
      %12 = sbr.rel (0) target = $region5
    $region4: #{lm_lstm_forward.3} parent=1 // pred_region
      %s14 = ssub.s32 128, 128
      %15 = vsyncadd [#allocation3], %s14
      %s16 = sshll.u32 [#allocation2], 4
      %s17 = int_to_ptr.vmem [resolvable:$true] %s16
      %22 = dma.hbm_to_vmem [thread:$0]  %s0, 128, %s17, [#allocation3], 64, 64, 4
    $region5: #{lm_lstm_forward.3} parent=1 // pred_fallthru
      _
    // Predicated region
    $region6: #{lm_lstm_forward.3} parent=1 // pred_check
      _
    $region7: #{lm_lstm_forward.3} parent=1 // pred_check_branch
      %24 = sbr.rel (0) target = $region9
    $region8: #{lm_lstm_forward.3} parent=1 // pred_region
      %s26 = ssub.s32 256, 256
      %27 = vsyncadd [#allocation6], %s26
      %s28 = sshll.u32 [#allocation5], 4
      %s29 = int_to_ptr.vmem [resolvable:$true] %s28
      %34 = dma.hbm_to_vmem [thread:$0]  %s1, 256, %s29, [#allocation6], 64, 64, 4
    $region9: #{lm_lstm_forward.3} parent=1 // pred_fallthru
      _
    // Predicated region
    $region10: #{lm_lstm_forward.3} parent=1 // pred_check
      _
    $region11: #{lm_lstm_forward.3} parent=1 // pred_check_branch
      %36 = sbr.rel (0) target = $region13
    $region12: #{lm_lstm_forward.3} parent=1 // pred_region
      %s38 = ssub.s32 16, 16
      %39 = vsyncadd [#allocation6], %s38
      %s41 = sshll.u32 [#allocation7], 4
      %s42 = int_to_ptr.vmem [resolvable:$true] %s41
      %44 = dma.hbm_to_vmem [thread:$0]  %s2, 16, %s42, [#allocation6]
    $region13: #{lm_lstm_forward.3} parent=1 // pred_fallthru
      _
    // Predicated region
    $region14: #{lm_lstm_forward.3} parent=1 // pred_check
      _
    $region15: #{lm_lstm_forward.3} parent=1 // pred_check_branch
      %46 = sbr.rel (0) target = $region17
    $region16: #{lm_lstm_forward.3} parent=1 // pred_region
      %47 = dma.done [#allocation3], 128
    $region17: #{lm_lstm_forward.3} parent=1 // pred_fallthru
      _
    // Predicated region
    $region18: #{lm_lstm_forward.3} parent=1 // pred_check
      _
    $region19: #{lm_lstm_forward.3} parent=1 // pred_check_branch
      %49 = sbr.rel (0) target = $region21
    $region20: #{lm_lstm_forward.3} parent=1 // pred_region
      %50 = dma.done [#allocation6], 256
    $region21: #{lm_lstm_forward.3} parent=1 // pred_fallthru
      _
    // Predicated region
    $region22: #{lm_lstm_forward.3} parent=1 // pred_check
      _
    $region23: #{lm_lstm_forward.3} parent=1 // pred_check_branch
      %52 = sbr.rel (0) target = $region25
    $region24: #{lm_lstm_forward.3} parent=1 // pred_region
      %53 = dma.done [#allocation6], 16
    $region25: #{lm_lstm_forward.3} parent=1 // pred_fallthru
      _
    %v55 = vld [vmem:[#allocation2] sm:$0xf]
    %v56 = vld [vmem:[#allocation2 + $0x4] sm:$0xf]
    %v57 = vld [vmem:[#allocation5] sm:$0xf]
    %v58 = vld [vmem:[#allocation5 + $0x4] sm:$0xf]
    %v59 = vld [vmem:[#allocation5 + $0x8] sm:$0xf]
    %v60 = vld [vmem:[#allocation5 + $0xc] sm:$0xf]
    %v61 = vld [vmem:[#allocation7] sm:$0x1]
    %v63 = vlaneseq
    %v64 = vshrl.u32 %v63, 7
    %v65 = vsub.s32 0, %v64
    %v66 = vrot.slane %v61, %v65
    %v70 = vunpack.c.l.b16 %v55
    %v71 = vunpack.c.l.b16 %v56
    %v72 = vpack.c.b16 %v71, %v70
    %v77 = vunpack.c.l.b16 %v57
    %v78 = vunpack.c.l.b16 %v58
    %v79 = vunpack.c.l.b16 %v59
    %v80 = vunpack.c.l.b16 %v60
    %v81 = vpack.c.b16 %v78, %v77
    %v82 = vpack.c.b16 %v80, %v79
    %vm85 = vcmask 261120
    %v87 = vsel %vm85, %v72, 0
    %89 = vmatprep.subr.bf16.mxu0 0
    %90 = vmatpush1.bf16.msra.mxu0 %v81
    %91 = vmatprep.subr.bf16.mxu0 0
    %92 = vmatpush1.bf16.msra.mxu0 %v82
    %93 = vmatprep.subr.bf16.mxu0 0
    %94 = vmatpush1.bf16.msra.mxu0 0
    %95 = vmatprep.subr.bf16.mxu0 0
    %96 = vmatpush1.bf16.msra.mxu0 0
    %97 = vmatprep.subr.bf16.mxu0 0
    %98 = vmatpush1.bf16.msra.mxu0 0
    %99 = vmatprep.subr.bf16.mxu0 0
    %100 = vmatpush1.bf16.msra.mxu0 0
    %101 = vmatprep.subr.bf16.mxu0 0
    %102 = vmatpush1.bf16.msra.mxu0 0
    %103 = vmatprep.subr.bf16.mxu0 0
    %104 = vmatpush1.bf16.msra.mxu0 0
    %105 = vmatprep.subr.bf16.mxu0 0
    %106 = vmatpush1.bf16.msra.mxu0 0
    %107 = vmatprep.subr.bf16.mxu0 0
    %108 = vmatpush1.bf16.msra.mxu0 0
    %109 = vmatprep.subr.bf16.mxu0 0
    %110 = vmatpush1.bf16.msra.mxu0 0
    %111 = vmatprep.subr.bf16.mxu0 0
    %112 = vmatpush1.bf16.msra.mxu0 0
    %113 = vmatprep.subr.bf16.mxu0 0
    %114 = vmatpush1.bf16.msra.mxu0 0
    %115 = vmatprep.subr.bf16.mxu0 0
    %116 = vmatpush1.bf16.msra.mxu0 0
    %117 = vmatprep.subr.bf16.mxu0 0
    %118 = vmatpush1.bf16.msra.mxu0 0
    %119 = vmatprep.subr.bf16.mxu0 0
    %120 = vmatpush1.bf16.msra.mxu0 0
    %121 = vmatprep.mubr.bf16.mxu0 0
    %122 = vmatmul.mubr.bf16.gmra.mrb[0].mxu0 %v87
    %v123 = vpop.f32.mrb[0].mxu0
    %v124 = vadd.f32 %v66, %v123
    %v125 = vpop.f32.mrb[0].mxu0
    %v126 = vpop.f32.mrb[0].mxu0
    %v127 = vadd.f32 %v66, %v126
    %v128 = vpop.f32.mrb[0].mxu0
    %129 = vdwg.mxu0
    %130 = vst [vmem:[#allocation8] sm:$0xff] %v124
    %131 = vst [vmem:[#allocation8 + $0x8] sm:$0xff] %v127
    // Predicated region
    $region26: #{lm_lstm_forward.3} parent=1 // pred_check
      _
    $region27: #{lm_lstm_forward.3} parent=1 // pred_check_branch
      %133 = sbr.rel (0) target = $region29
    $region28: #{lm_lstm_forward.3} parent=1 // pred_region
      %s135 = ssub.s32 256, 256
      %136 = vsyncadd [#allocation4], %s135
      %s137 = sshll.u32 [#allocation8], 4
      %s138 = int_to_ptr.vmem [resolvable:$true] %s137
      %143 = dma.vmem_to_hbm [thread:$0]  %s138, 256, %s3, [#allocation4], 128, 128, 8
    $region29: #{lm_lstm_forward.3} parent=1 // pred_fallthru
      _
    // Predicated region
    $region30: #{lm_lstm_forward.3} parent=1 // pred_check
      _
    $region31: #{lm_lstm_forward.3} parent=1 // pred_check_branch
      %145 = sbr.rel (0) target = $region33
    $region32: #{lm_lstm_forward.3} parent=1 // pred_region
      %146 = dma.done [#allocation4], 256
    $region33: #{lm_lstm_forward.3} parent=1 // pred_fallthru
      _
    %147 = vsyncpa [#allocation3], 1
    %148 = vsyncpa [#allocation6], 1
    %149 = vsyncpa [#allocation4], 1

// kernel: lm_lstm_forward.5
$region0: #{lm_lstm_forward.5}
  #allocation0 [shape = 'u32[]', space=smem, size = 0x4, offset = 0x4, fixed_abs, tag = 'smem constant byte address 0x4 - core index']
  #allocation1 [shape = 'u32[144,128]{1,0:T(1,128)}', space=vmem, size = 0x12000, scoped, tag = 'internal scratch']
  %s0 = inlined_call_operand.hbm [shape: bf16[16,32], index: 0, kind: input, shape index: {}]
  %s1 = inlined_call_operand.hbm [shape: bf16[32,16], index: 1, kind: input, shape index: {}]
  %s2 = inlined_call_operand.hbm [shape: f32[1,16], index: 2, kind: input, shape index: {}]
  %s3 = inlined_call_operand.hbm [shape: f32[16,16], index: 3, kind: output, shape index: {}]
  %s4 = sld [smem:[#allocation0]]
  $region34: #{lm_lstm_forward.5} parent=0
    _
  %s6 = ssub.s32 1, %s4
  %s7 = scalar_select 0, %s6, %s4
  $region1: #{lm_lstm_forward.5} parent=0
    #allocation2 [shape = 'u8[4096]{0}', space=vmem, size = 0x1000, scoped, tag = 'input window, operand 0, single buffered']
    #allocation3 [shape = 's32[1]{0}', space=sflag, size = 0x4, scoped, tag = 'scoped memory for lm_lstm_forward.5']
    #allocation4 [shape = 's32[1]{0}', space=sflag, size = 0x4, scoped, tag = 'scoped memory for lm_lstm_forward.5']
    #allocation5 [shape = 'u8[8192]{0}', space=vmem, size = 0x2000, scoped, tag = 'input window, operand 1, single buffered']
    #allocation6 [shape = 's32[1]{0}', space=sflag, size = 0x4, scoped, tag = 'scoped memory for lm_lstm_forward.5']
    #allocation7 [shape = 'u8[512]{0}', space=vmem, size = 0x400, scoped, tag = 'input window, operand 2, single buffered']
    #allocation8 [shape = 'u8[8192]{0}', space=vmem, size = 0x2000, scoped, tag = 'output window, operand 0, single buffered']
    %8 = vsyncpa [#allocation3], 0
    %9 = vsyncpa [#allocation6], 0
    %10 = vsyncpa [#allocation4], 0
    // Predicated region
    $region2: #{lm_lstm_forward.5} parent=1 // pred_check
      _
    $region3: #{lm_lstm_forward.5} parent=1 // pred_check_branch
      %12 = sbr.rel (0) target = $region5
    $region4: #{lm_lstm_forward.5} parent=1 // pred_region
      %s14 = ssub.s32 128, 128
      %15 = vsyncadd [#allocation3], %s14
      %s16 = sshll.u32 [#allocation2], 4
      %s17 = int_to_ptr.vmem [resolvable:$true] %s16
      %22 = dma.hbm_to_vmem [thread:$0]  %s0, 128, %s17, [#allocation3], 64, 64, 4
    $region5: #{lm_lstm_forward.5} parent=1 // pred_fallthru
      _
    // Predicated region
    $region6: #{lm_lstm_forward.5} parent=1 // pred_check
      _
    $region7: #{lm_lstm_forward.5} parent=1 // pred_check_branch
      %24 = sbr.rel (0) target = $region9
    $region8: #{lm_lstm_forward.5} parent=1 // pred_region
      %s26 = ssub.s32 256, 256
      %27 = vsyncadd [#allocation6], %s26
      %s28 = sshll.u32 [#allocation5], 4
      %s29 = int_to_ptr.vmem [resolvable:$true] %s28
      %34 = dma.hbm_to_vmem [thread:$0]  %s1, 256, %s29, [#allocation6], 64, 64, 4
    $region9: #{lm_lstm_forward.5} parent=1 // pred_fallthru
      _
    // Predicated region
    $region10: #{lm_lstm_forward.5} parent=1 // pred_check
      _
    $region11: #{lm_lstm_forward.5} parent=1 // pred_check_branch
      %36 = sbr.rel (0) target = $region13
    $region12: #{lm_lstm_forward.5} parent=1 // pred_region
      %s38 = ssub.s32 16, 16
      %39 = vsyncadd [#allocation6], %s38
      %s41 = sshll.u32 [#allocation7], 4
      %s42 = int_to_ptr.vmem [resolvable:$true] %s41
      %44 = dma.hbm_to_vmem [thread:$0]  %s2, 16, %s42, [#allocation6]
    $region13: #{lm_lstm_forward.5} parent=1 // pred_fallthru
      _
    // Predicated region
    $region14: #{lm_lstm_forward.5} parent=1 // pred_check
      _
    $region15: #{lm_lstm_forward.5} parent=1 // pred_check_branch
      %46 = sbr.rel (0) target = $region17
    $region16: #{lm_lstm_forward.5} parent=1 // pred_region
      %47 = dma.done [#allocation3], 128
    $region17: #{lm_lstm_forward.5} parent=1 // pred_fallthru
      _
    // Predicated region
    $region18: #{lm_lstm_forward.5} parent=1 // pred_check
      _
    $region19: #{lm_lstm_forward.5} parent=1 // pred_check_branch
      %49 = sbr.rel (0) target = $region21
    $region20: #{lm_lstm_forward.5} parent=1 // pred_region
      %50 = dma.done [#allocation6], 256
    $region21: #{lm_lstm_forward.5} parent=1 // pred_fallthru
      _
    // Predicated region
    $region22: #{lm_lstm_forward.5} parent=1 // pred_check
      _
    $region23: #{lm_lstm_forward.5} parent=1 // pred_check_branch
      %52 = sbr.rel (0) target = $region25
    $region24: #{lm_lstm_forward.5} parent=1 // pred_region
      %53 = dma.done [#allocation6], 16
    $region25: #{lm_lstm_forward.5} parent=1 // pred_fallthru
      _
    %v55 = vld [vmem:[#allocation2] sm:$0xf]
    %v56 = vld [vmem:[#allocation2 + $0x4] sm:$0xf]
    %v57 = vld [vmem:[#allocation5] sm:$0xf]
    %v58 = vld [vmem:[#allocation5 + $0x4] sm:$0xf]
    %v59 = vld [vmem:[#allocation5 + $0x8] sm:$0xf]
    %v60 = vld [vmem:[#allocation5 + $0xc] sm:$0xf]
    %v61 = vld [vmem:[#allocation7] sm:$0x1]
    %v63 = vlaneseq
    %v64 = vshrl.u32 %v63, 7
    %v65 = vsub.s32 0, %v64
    %v66 = vrot.slane %v61, %v65
    %v70 = vunpack.c.l.b16 %v55
    %v71 = vunpack.c.l.b16 %v56
    %v72 = vpack.c.b16 %v71, %v70
    %v77 = vunpack.c.l.b16 %v57
    %v78 = vunpack.c.l.b16 %v58
    %v79 = vunpack.c.l.b16 %v59
    %v80 = vunpack.c.l.b16 %v60
    %v81 = vpack.c.b16 %v78, %v77
    %v82 = vpack.c.b16 %v80, %v79
    %vm85 = vcmask 261120
    %v87 = vsel %vm85, %v72, 0
    %89 = vmatprep.subr.bf16.mxu0 0
    %90 = vmatpush1.bf16.msra.mxu0 %v81
    %91 = vmatprep.subr.bf16.mxu0 0
    %92 = vmatpush1.bf16.msra.mxu0 %v82
    %93 = vmatprep.subr.bf16.mxu0 0
    %94 = vmatpush1.bf16.msra.mxu0 0
    %95 = vmatprep.subr.bf16.mxu0 0
    %96 = vmatpush1.bf16.msra.mxu0 0
    %97 = vmatprep.subr.bf16.mxu0 0
    %98 = vmatpush1.bf16.msra.mxu0 0
    %99 = vmatprep.subr.bf16.mxu0 0
    %100 = vmatpush1.bf16.msra.mxu0 0
    %101 = vmatprep.subr.bf16.mxu0 0
    %102 = vmatpush1.bf16.msra.mxu0 0
    %103 = vmatprep.subr.bf16.mxu0 0
    %104 = vmatpush1.bf16.msra.mxu0 0
    %105 = vmatprep.subr.bf16.mxu0 0
    %106 = vmatpush1.bf16.msra.mxu0 0
    %107 = vmatprep.subr.bf16.mxu0 0
    %108 = vmatpush1.bf16.msra.mxu0 0
    %109 = vmatprep.subr.bf16.mxu0 0
    %110 = vmatpush1.bf16.msra.mxu0 0
    %111 = vmatprep.subr.bf16.mxu0 0
    %112 = vmatpush1.bf16.msra.mxu0 0
    %113 = vmatprep.subr.bf16.mxu0 0
    %114 = vmatpush1.bf16.msra.mxu0 0
    %115 = vmatprep.subr.bf16.mxu0 0
    %116 = vmatpush1.bf16.msra.mxu0 0
    %117 = vmatprep.subr.bf16.mxu0 0
    %118 = vmatpush1.bf16.msra.mxu0 0
    %119 = vmatprep.subr.bf16.mxu0 0
    %120 = vmatpush1.bf16.msra.mxu0 0
    %121 = vmatprep.mubr.bf16.mxu0 0
    %122 = vmatmul.mubr.bf16.gmra.mrb[0].mxu0 %v87
    %v123 = vpop.f32.mrb[0].mxu0
    %v124 = vadd.f32 %v66, %v123
    %v125 = vpop.f32.mrb[0].mxu0
    %v126 = vpop.f32.mrb[0].mxu0
    %v127 = vadd.f32 %v66, %v126
    %v128 = vpop.f32.mrb[0].mxu0
    %129 = vdwg.mxu0
    %vm130 = vcmask 130048
    %131 = vst.msk [vmem:[#allocation8] sm:$0xff] %vm130, %v124
    %132 = vst.msk [vmem:[#allocation8 + $0x8] sm:$0xff] %vm130, %v127
    // Predicated region
    $region26: #{lm_lstm_forward.5} parent=1 // pred_check
      _
    $region27: #{lm_lstm_forward.5} parent=1 // pred_check_branch
      %134 = sbr.rel (0) target = $region29
    $region28: #{lm_lstm_forward.5} parent=1 // pred_region
      %s136 = ssub.s32 256, 256
      %137 = vsyncadd [#allocation4], %s136
      %s138 = sshll.u32 [#allocation8], 4
      %s139 = int_to_ptr.vmem [resolvable:$true] %s138
      %144 = dma.vmem_to_hbm [thread:$0]  %s139, 256, %s3, [#allocation4], 128, 128, 8
    $region29: #{lm_lstm_forward.5} parent=1 // pred_fallthru
      _
    // Predicated region
    $region30: #{lm_lstm_forward.5} parent=1 // pred_check
      _
    $region31: #{lm_lstm_forward.5} parent=1 // pred_check_branch
      %146 = sbr.rel (0) target = $region33
    $region32: #{lm_lstm_forward.5} parent=1 // pred_region
      %147 = dma.done [#allocation4], 256
    $region33: #{lm_lstm_forward.5} parent=1 // pred_fallthru
      _
    %148 = vsyncpa [#allocation3], 1
    %149 = vsyncpa [#allocation6], 1
    %150 = vsyncpa [#allocation4], 1

// kernel: lm_lstm_forward.4
$region0: #{lm_lstm_forward.4}
  #allocation0 [shape = 'u32[]', space=smem, size = 0x4, offset = 0x4, fixed_abs, tag = 'smem constant byte address 0x4 - core index']
  #allocation1 [shape = 'u32[144,128]{1,0:T(1,128)}', space=vmem, size = 0x12000, scoped, tag = 'internal scratch']
  #allocation2 [shape = 'f32[2,32]{1,0:T(2,128)}', space=vmem, size = 0x400, scoped, tag = 'scratch operand']
  #allocation3 [shape = 'f32[2,32]{1,0:T(2,128)}', space=vmem, size = 0x400, scoped, tag = 'scratch operand']
  %s0 = inlined_call_operand.hbm [shape: f32[8,2,128], index: 0, kind: input, shape index: {}]
  %s1 = inlined_call_operand.hbm [shape: f32[2,32], index: 1, kind: input, shape index: {}]
  %s2 = inlined_call_operand.hbm [shape: f32[2,32], index: 2, kind: input, shape index: {}]
  %s3 = inlined_call_operand.hbm [shape: s32[2,1], index: 3, kind: input, shape index: {}]
  %s4 = inlined_call_operand.hbm [shape: bf16[32,128], index: 4, kind: input, shape index: {}]
  %s5 = inlined_call_operand.hbm [shape: f32[8,2,32], index: 5, kind: output, shape index: {0}]
  %s6 = inlined_call_operand.hbm [shape: f32[2,32], index: 6, kind: output, shape index: {1}]
  %s7 = inlined_call_operand.hbm [shape: f32[2,32], index: 7, kind: output, shape index: {2}]
  %8 = xla_tuple %s5, %s6, %s7
  %s9 = sld [smem:[#allocation0]]
  $region74: #{lm_lstm_forward.4} parent=0
    _
  %s11 = ssub.s32 1, %s9
  %s12 = scalar_select 0, %s11, %s9
  $region1: #{lm_lstm_forward.4} parent=0
    #allocation4 [shape = 'u8[8192]{0}', space=vmem, size = 0x2000, scoped, tag = 'input window, operand 0, single buffered']
    #allocation5 [shape = 's32[1]{0}', space=sflag, size = 0x4, scoped, tag = 'scoped memory for lm_lstm_forward.4']
    #allocation6 [shape = 's32[1]{0}', space=sflag, size = 0x4, scoped, tag = 'scoped memory for lm_lstm_forward.4']
    #allocation7 [shape = 'u8[1024]{0}', space=vmem, size = 0x400, scoped, tag = 'input window, operand 1, single buffered']
    #allocation8 [shape = 's32[1]{0}', space=sflag, size = 0x4, scoped, tag = 'scoped memory for lm_lstm_forward.4']
    #allocation9 [shape = 'u8[1024]{0}', space=vmem, size = 0x400, scoped, tag = 'input window, operand 2, single buffered']
    #allocation10 [shape = 'u8[1024]{0}', space=vmem, size = 0x400, scoped, tag = 'input window, operand 3, single buffered']
    #allocation11 [shape = 's32[1]{0}', space=sflag, size = 0x4, scoped, tag = 'scoped memory for lm_lstm_forward.4']
    #allocation12 [shape = 'u8[8192]{0}', space=vmem, size = 0x2000, scoped, tag = 'input window, operand 4, single buffered']
    #allocation13 [shape = 'u8[8192]{0}', space=vmem, size = 0x2000, scoped, tag = 'output window, operand 0, single buffered']
    #allocation14 [shape = 'u8[1024]{0}', space=vmem, size = 0x400, scoped, tag = 'output window, operand 1, single buffered']
    #allocation15 [shape = 's32[1]{0}', space=sflag, size = 0x4, scoped, tag = 'scoped memory for lm_lstm_forward.4']
    #allocation16 [shape = 'u8[1024]{0}', space=vmem, size = 0x400, scoped, tag = 'output window, operand 2, single buffered']
    %13 = vsyncpa [#allocation5], 0
    %14 = vsyncpa [#allocation8], 0
    %15 = vsyncpa [#allocation11], 0
    %16 = vsyncpa [#allocation6], 0
    %17 = vsyncpa [#allocation15], 0
    // Predicated region
    $region2: #{lm_lstm_forward.4} parent=1 // pred_check
      _
    $region3: #{lm_lstm_forward.4} parent=1 // pred_check_branch
      %19 = sbr.rel (0) target = $region5
    $region4: #{lm_lstm_forward.4} parent=1 // pred_region
      %s21 = ssub.s32 256, 256
      %22 = vsyncadd [#allocation5], %s21
      %s23 = sshll.u32 [#allocation4], 4
      %s24 = int_to_ptr.vmem [resolvable:$true] %s23
      %29 = dma.hbm_to_vmem [thread:$0]  %s0, 256, %s24, [#allocation5], 32, 32, 2
    $region5: #{lm_lstm_forward.4} parent=1 // pred_fallthru
      _
    // Predicated region
    $region6: #{lm_lstm_forward.4} parent=1 // pred_check
      _
    $region7: #{lm_lstm_forward.4} parent=1 // pred_check_branch
      %31 = sbr.rel (0) target = $region9
    $region8: #{lm_lstm_forward.4} parent=1 // pred_region
      %s33 = ssub.s32 32, 32
      %34 = vsyncadd [#allocation8], %s33
      %s36 = sshll.u32 [#allocation7], 4
      %s37 = int_to_ptr.vmem [resolvable:$true] %s36
      %39 = dma.hbm_to_vmem [thread:$0]  %s1, 32, %s37, [#allocation8]
    $region9: #{lm_lstm_forward.4} parent=1 // pred_fallthru
      _
    // Predicated region
    $region10: #{lm_lstm_forward.4} parent=1 // pred_check
      _
    $region11: #{lm_lstm_forward.4} parent=1 // pred_check_branch
      %41 = sbr.rel (0) target = $region13
    $region12: #{lm_lstm_forward.4} parent=1 // pred_region
      %s43 = ssub.s32 32, 32
      %44 = vsyncadd [#allocation8], %s43
      %s46 = sshll.u32 [#allocation9], 4
      %s47 = int_to_ptr.vmem [resolvable:$true] %s46
      %49 = dma.hbm_to_vmem [thread:$0]  %s2, 32, %s47, [#allocation8]
    $region13: #{lm_lstm_forward.4} parent=1 // pred_fallthru
      _
    // Predicated region
    $region14: #{lm_lstm_forward.4} parent=1 // pred_check
      _
    $region15: #{lm_lstm_forward.4} parent=1 // pred_check_branch
      %51 = sbr.rel (0) target = $region17
    $region16: #{lm_lstm_forward.4} parent=1 // pred_region
      %s53 = ssub.s32 32, 32
      %54 = vsyncadd [#allocation11], %s53
      %s56 = sshll.u32 [#allocation10], 4
      %s57 = int_to_ptr.vmem [resolvable:$true] %s56
      %59 = dma.hbm_to_vmem [thread:$0]  %s3, 32, %s57, [#allocation11]
    $region17: #{lm_lstm_forward.4} parent=1 // pred_fallthru
      _
    // Predicated region
    $region18: #{lm_lstm_forward.4} parent=1 // pred_check
      _
    $region19: #{lm_lstm_forward.4} parent=1 // pred_check_branch
      %61 = sbr.rel (0) target = $region21
    $region20: #{lm_lstm_forward.4} parent=1 // pred_region
      %s63 = ssub.s32 256, 256
      %64 = vsyncadd [#allocation11], %s63
      %s65 = sshll.u32 [#allocation12], 4
      %s66 = int_to_ptr.vmem [resolvable:$true] %s65
      %71 = dma.hbm_to_vmem [thread:$0]  %s4, 256, %s66, [#allocation11], 64, 64, 4
    $region21: #{lm_lstm_forward.4} parent=1 // pred_fallthru
      _
    // Predicated region
    $region22: #{lm_lstm_forward.4} parent=1 // pred_check
      _
    $region23: #{lm_lstm_forward.4} parent=1 // pred_check_branch
      %73 = sbr.rel (0) target = $region25
    $region24: #{lm_lstm_forward.4} parent=1 // pred_region
      %74 = dma.done [#allocation5], 256
    $region25: #{lm_lstm_forward.4} parent=1 // pred_fallthru
      _
    // Predicated region
    $region26: #{lm_lstm_forward.4} parent=1 // pred_check
      _
    $region27: #{lm_lstm_forward.4} parent=1 // pred_check_branch
      %76 = sbr.rel (0) target = $region29
    $region28: #{lm_lstm_forward.4} parent=1 // pred_region
      %77 = dma.done [#allocation8], 32
    $region29: #{lm_lstm_forward.4} parent=1 // pred_fallthru
      _
    // Predicated region
    $region30: #{lm_lstm_forward.4} parent=1 // pred_check
      _
    $region31: #{lm_lstm_forward.4} parent=1 // pred_check_branch
      %79 = sbr.rel (0) target = $region33
    $region32: #{lm_lstm_forward.4} parent=1 // pred_region
      %80 = dma.done [#allocation8], 32
    $region33: #{lm_lstm_forward.4} parent=1 // pred_fallthru
      _
    // Predicated region
    $region34: #{lm_lstm_forward.4} parent=1 // pred_check
      _
    $region35: #{lm_lstm_forward.4} parent=1 // pred_check_branch
      %82 = sbr.rel (0) target = $region37
    $region36: #{lm_lstm_forward.4} parent=1 // pred_region
      %83 = dma.done [#allocation11], 32
    $region37: #{lm_lstm_forward.4} parent=1 // pred_fallthru
      _
    // Predicated region
    $region38: #{lm_lstm_forward.4} parent=1 // pred_check
      _
    $region39: #{lm_lstm_forward.4} parent=1 // pred_check_branch
      %85 = sbr.rel (0) target = $region41
    $region40: #{lm_lstm_forward.4} parent=1 // pred_region
      %86 = dma.done [#allocation11], 256
    $region41: #{lm_lstm_forward.4} parent=1 // pred_fallthru
      _
    %p88 = scmp.eq.s32.totalorder 0, 0
    // Predicated region
    $region42: #{lm_lstm_forward.4} parent=1 // pred_check
      %p89 = pneg %p88
    $region43: #{lm_lstm_forward.4} parent=1 // pred_check_branch
      %91 = sbr.rel (%p89) target = $region45
    $region44: #{lm_lstm_forward.4} parent=1 // pred_region
      %v92 = vld [vmem:[#allocation7] sm:$0x3]
      %vm93 = vcmask 254976
      %94 = vst.msk [vmem:[#allocation2] sm:$0x3] %vm93, %v92
      %v95 = vld [vmem:[#allocation9] sm:$0x3]
      %96 = vst.msk [vmem:[#allocation3] sm:$0x3] %vm93, %v95
    $region45: #{lm_lstm_forward.4} parent=1 // pred_fallthru
      _
    %v97 = vld [vmem:[#allocation12] sm:$0xf]
    %v98 = vld [vmem:[#allocation12 + $0x4] sm:$0xf]
    %v99 = vld [vmem:[#allocation12 + $0x8] sm:$0xf]
    %v100 = vld [vmem:[#allocation12 + $0xc] sm:$0xf]
    %v101 = vld [vmem:[#allocation10] sm:$0x3]
    %s102 = smul.u32 0, 8
    %v103 = vld [vmem:[#allocation2] sm:$0x3]
    %v104 = vld [vmem:[#allocation3] sm:$0x3]
    %v105 = vld [vmem:[#allocation4] sm:$0x3]
    %v106 = vpack.c.bf16 %v103, %v103
    %v111 = vunpack.c.l.b16 %v97
    %v112 = vunpack.c.l.b16 %v98
    %v113 = vunpack.c.l.b16 %v99
    %v114 = vunpack.c.l.b16 %v100
    %v115 = vpack.c.b16 %v112, %v111
    %v116 = vpack.c.b16 %v114, %v113
    %vm119 = vcmask 261120
    %v121 = vsel %vm119, %v106, 0
    %123 = vmatprep.subr.bf16.mxu0 0
    %124 = vmatpush1.bf16.msra.mxu0 %v115
    %125 = vmatprep.subr.bf16.mxu0 0
    %126 = vmatpush1.bf16.msra.mxu0 %v116
    %127 = vmatprep.subr.bf16.mxu0 0
    %128 = vmatpush1.bf16.msra.mxu0 0
    %129 = vmatprep.subr.bf16.mxu0 0
    %130 = vmatpush1.bf16.msra.mxu0 0
    %131 = vmatprep.subr.bf16.mxu0 0
    %132 = vmatpush1.bf16.msra.mxu0 0
    %133 = vmatprep.subr.bf16.mxu0 0
    %134 = vmatpush1.bf16.msra.mxu0 0
    %135 = vmatprep.subr.bf16.mxu0 0
    %136 = vmatpush1.bf16.msra.mxu0 0
    %137 = vmatprep.subr.bf16.mxu0 0
    %138 = vmatpush1.bf16.msra.mxu0 0
    %139 = vmatprep.subr.bf16.mxu0 0
    %140 = vmatpush1.bf16.msra.mxu0 0
    %141 = vmatprep.subr.bf16.mxu0 0
    %142 = vmatpush1.bf16.msra.mxu0 0
    %143 = vmatprep.subr.bf16.mxu0 0
    %144 = vmatpush1.bf16.msra.mxu0 0
    %145 = vmatprep.subr.bf16.mxu0 0
    %146 = vmatpush1.bf16.msra.mxu0 0
    %147 = vmatprep.subr.bf16.mxu0 0
    %148 = vmatpush1.bf16.msra.mxu0 0
    %149 = vmatprep.subr.bf16.mxu0 0
    %150 = vmatpush1.bf16.msra.mxu0 0
    %151 = vmatprep.subr.bf16.mxu0 0
    %152 = vmatpush1.bf16.msra.mxu0 0
    %153 = vmatprep.subr.bf16.mxu0 0
    %154 = vmatpush1.bf16.msra.mxu0 0
    %155 = vmatprep.mubr.bf16.mxu0 0
    %156 = vmatmul.mubr.bf16.gmra.mrb[0].mxu0 %v121
    %v157 = vpop.f32.mrb[0].mxu0
    %v158 = vadd.f32 0.0, %v157
    %v159 = vpop.f32.mrb[0].mxu0
    %v160 = vpop.f32.mrb[0].mxu0
    %v161 = vpop.f32.mrb[0].mxu0
    %162 = vdwg.mxu0
    %v163 = vadd.f32 %v105, %v158
    %v164 = vxor.u32 %v163, 2147483648
    %v165 = vmul.f32 %v164, 1.442695
    %v166 = vpow.pop %v165
    %v167 = vadd.f32 %v166, 1.0
    %v168 = vrcp.pop %v167
    %v169 = vmul.f32 1.0, %v168
    %v170 = vtanh.pop %v163
    %172 = vrot.lane.b32.xlu0 %v104, 32
    %v173 = vpop.permute.xlu0 %172
    %v175 = vmul.f32 %v169, %v173
    %177 = vrot.lane.b32.xlu0 %v170, 64
    %v178 = vpop.permute.xlu0 %177
    %v180 = vmul.f32 %v169, %v178
    %182 = vrot.lane.b32.xlu0 %v180, 32
    %v183 = vpop.permute.xlu0 %182
    %v185 = vadd.f32 %v175, %v183
    %v186 = vtanh.pop %v185
    %188 = vrot.lane.b32.xlu0 %v186, 64
    %v189 = vpop.permute.xlu0 %188
    %v191 = vmul.f32 %v169, %v189
    %v192 = vstv %s102
    %vm193 = vcmp.gt.s32.totalorder %v101, %v192
    %v194 = vsel %vm193, 1, 0
    %195 = vset.pattern.permute.xlu0 0
    %196 = vperm.xlu0 %195, %v194
    %v197 = vpop.permute.xlu0 %196
    %vm198 = vcmp.eq.s32.totalorder %v197, 1
    %v199 = vsel %vm198, %v185, %v173
    %201 = vrot.lane.b32.xlu0 %v103, 96
    %v202 = vpop.permute.xlu0 %201
    %v204 = vsel %vm198, %v191, %v202
    %v205 = vsel %vm198, %v191, 0.0
    %207 = vrot.lane.b32.xlu0 %v205, 32
    %v208 = vpop.permute.xlu0 %207
    %vm210 = vcmask 254976
    %211 = vst.msk [vmem:[#allocation13] sm:$0x3] %vm210, %v208
    %s212 = scalar_lea.vmem [#allocation4], 2
    %v213 = vld [vmem:[%s212] sm:$0x3]
    %v214 = vpack.c.bf16 %v204, %v204
    %216 = vrot.lane.b32.xlu0 %v214, 32
    %v217 = vpop.permute.xlu0 %216
    %v219 = vsel %vm119, %v217, 0
    %221 = vmatprep.subr.bf16.mxu0 0
    %222 = vmatpush1.bf16.msra.mxu0 %v115
    %223 = vmatprep.subr.bf16.mxu0 0
    %224 = vmatpush1.bf16.msra.mxu0 %v116
    %225 = vmatprep.subr.bf16.mxu0 0
    %226 = vmatpush1.bf16.msra.mxu0 0
    %227 = vmatprep.subr.bf16.mxu0 0
    %228 = vmatpush1.bf16.msra.mxu0 0
    %229 = vmatprep.subr.bf16.mxu0 0
    %230 = vmatpush1.bf16.msra.mxu0 0
    %231 = vmatprep.subr.bf16.mxu0 0
    %232 = vmatpush1.bf16.msra.mxu0 0
    %233 = vmatprep.subr.bf16.mxu0 0
    %234 = vmatpush1.bf16.msra.mxu0 0
    %235 = vmatprep.subr.bf16.mxu0 0
    %236 = vmatpush1.bf16.msra.mxu0 0
    %237 = vmatprep.subr.bf16.mxu0 0
    %238 = vmatpush1.bf16.msra.mxu0 0
    %239 = vmatprep.subr.bf16.mxu0 0
    %240 = vmatpush1.bf16.msra.mxu0 0
    %241 = vmatprep.subr.bf16.mxu0 0
    %242 = vmatpush1.bf16.msra.mxu0 0
    %243 = vmatprep.subr.bf16.mxu0 0
    %244 = vmatpush1.bf16.msra.mxu0 0
    %245 = vmatprep.subr.bf16.mxu0 0
    %246 = vmatpush1.bf16.msra.mxu0 0
    %247 = vmatprep.subr.bf16.mxu0 0
    %248 = vmatpush1.bf16.msra.mxu0 0
    %249 = vmatprep.subr.bf16.mxu0 0
    %250 = vmatpush1.bf16.msra.mxu0 0
    %251 = vmatprep.subr.bf16.mxu0 0
    %252 = vmatpush1.bf16.msra.mxu0 0
    %253 = vmatprep.mubr.bf16.mxu0 0
    %254 = vmatmul.mubr.bf16.gmra.mrb[0].mxu0 %v219
    %v255 = vpop.f32.mrb[0].mxu0
    %v256 = vadd.f32 0.0, %v255
    %v257 = vpop.f32.mrb[0].mxu0
    %v258 = vpop.f32.mrb[0].mxu0
    %v259 = vpop.f32.mrb[0].mxu0
    %260 = vdwg.mxu0
    %v261 = vadd.f32 %v213, %v256
    %v262 = vxor.u32 %v261, 2147483648
    %v263 = vmul.f32 %v262, 1.442695
    %v264 = vpow.pop %v263
    %v265 = vadd.f32 %v264, 1.0
    %v266 = vrcp.pop %v265
    %v267 = vmul.f32 1.0, %v266
    %v268 = vtanh.pop %v261
    %v269 = vmul.f32 %v267, %v199
    %271 = vrot.lane.b32.xlu0 %v268, 64
    %v272 = vpop.permute.xlu0 %271
    %v274 = vmul.f32 %v267, %v272
    %276 = vrot.lane.b32.xlu0 %v274, 32
    %v277 = vpop.permute.xlu0 %276
    %v279 = vadd.f32 %v269, %v277
    %v280 = vtanh.pop %v279
    %282 = vrot.lane.b32.xlu0 %v280, 64
    %v283 = vpop.permute.xlu0 %282
    %v285 = vmul.f32 %v267, %v283
    %s286 = sadd.s32 %s102, 1
    %v287 = vstv %s286
    %vm288 = vcmp.gt.s32.totalorder %v101, %v287
    %v289 = vsel %vm288, 1, 0
    %290 = vset.pattern.permute.xlu0 0
    %291 = vperm.xlu0 %290, %v289
    %v292 = vpop.permute.xlu0 %291
    %vm293 = vcmp.eq.s32.totalorder %v292, 1
    %v294 = vsel %vm293, %v279, %v199
    %v295 = vsel %vm293, %v285, %v204
    %v296 = vsel %vm293, %v285, 0.0
    %298 = vrot.lane.b32.xlu0 %v296, 32
    %v299 = vpop.permute.xlu0 %298
    %s301 = scalar_lea.vmem [#allocation13], 2
    %302 = vst.msk [vmem:[%s301] sm:$0x3] %vm210, %v299
    %s303 = scalar_lea.vmem [#allocation4], 4
    %v304 = vld [vmem:[%s303] sm:$0x3]
    %v305 = vpack.c.bf16 %v295, %v295
    %307 = vrot.lane.b32.xlu0 %v305, 32
    %v308 = vpop.permute.xlu0 %307
    %v310 = vsel %vm119, %v308, 0
    %312 = vmatprep.subr.bf16.mxu0 0
    %313 = vmatpush1.bf16.msra.mxu0 %v115
    %314 = vmatprep.subr.bf16.mxu0 0
    %315 = vmatpush1.bf16.msra.mxu0 %v116
    %316 = vmatprep.subr.bf16.mxu0 0
    %317 = vmatpush1.bf16.msra.mxu0 0
    %318 = vmatprep.subr.bf16.mxu0 0
    %319 = vmatpush1.bf16.msra.mxu0 0
    %320 = vmatprep.subr.bf16.mxu0 0
    %321 = vmatpush1.bf16.msra.mxu0 0
    %322 = vmatprep.subr.bf16.mxu0 0
    %323 = vmatpush1.bf16.msra.mxu0 0
    %324 = vmatprep.subr.bf16.mxu0 0
    %325 = vmatpush1.bf16.msra.mxu0 0
    %326 = vmatprep.subr.bf16.mxu0 0
    %327 = vmatpush1.bf16.msra.mxu0 0
    %328 = vmatprep.subr.bf16.mxu0 0
    %329 = vmatpush1.bf16.msra.mxu0 0
    %330 = vmatprep.subr.bf16.mxu0 0
    %331 = vmatpush1.bf16.msra.mxu0 0
    %332 = vmatprep.subr.bf16.mxu0 0
    %333 = vmatpush1.bf16.msra.mxu0 0
    %334 = vmatprep.subr.bf16.mxu0 0
    %335 = vmatpush1.bf16.msra.mxu0 0
    %336 = vmatprep.subr.bf16.mxu0 0
    %337 = vmatpush1.bf16.msra.mxu0 0
    %338 = vmatprep.subr.bf16.mxu0 0
    %339 = vmatpush1.bf16.msra.mxu0 0
    %340 = vmatprep.subr.bf16.mxu0 0
    %341 = vmatpush1.bf16.msra.mxu0 0
    %342 = vmatprep.subr.bf16.mxu0 0
    %343 = vmatpush1.bf16.msra.mxu0 0
    %344 = vmatprep.mubr.bf16.mxu0 0
    %345 = vmatmul.mubr.bf16.gmra.mrb[0].mxu0 %v310
    %v346 = vpop.f32.mrb[0].mxu0
    %v347 = vadd.f32 0.0, %v346
    %v348 = vpop.f32.mrb[0].mxu0
    %v349 = vpop.f32.mrb[0].mxu0
    %v350 = vpop.f32.mrb[0].mxu0
    %351 = vdwg.mxu0
    %v352 = vadd.f32 %v304, %v347
    %v353 = vxor.u32 %v352, 2147483648
    %v354 = vmul.f32 %v353, 1.442695
    %v355 = vpow.pop %v354
    %v356 = vadd.f32 %v355, 1.0
    %v357 = vrcp.pop %v356
    %v358 = vmul.f32 1.0, %v357
    %v359 = vtanh.pop %v352
    %v360 = vmul.f32 %v358, %v294
    %362 = vrot.lane.b32.xlu0 %v359, 64
    %v363 = vpop.permute.xlu0 %362
    %v365 = vmul.f32 %v358, %v363
    %367 = vrot.lane.b32.xlu0 %v365, 32
    %v368 = vpop.permute.xlu0 %367
    %v370 = vadd.f32 %v360, %v368
    %v371 = vtanh.pop %v370
    %373 = vrot.lane.b32.xlu0 %v371, 64
    %v374 = vpop.permute.xlu0 %373
    %v376 = vmul.f32 %v358, %v374
    %s377 = sadd.s32 %s102, 2
    %v378 = vstv %s377
    %vm379 = vcmp.gt.s32.totalorder %v101, %v378
    %v380 = vsel %vm379, 1, 0
    %381 = vset.pattern.permute.xlu0 0
    %382 = vperm.xlu0 %381, %v380
    %v383 = vpop.permute.xlu0 %382
    %vm384 = vcmp.eq.s32.totalorder %v383, 1
    %v385 = vsel %vm384, %v370, %v294
    %v386 = vsel %vm384, %v376, %v295
    %v387 = vsel %vm384, %v376, 0.0
    %389 = vrot.lane.b32.xlu0 %v387, 32
    %v390 = vpop.permute.xlu0 %389
    %s392 = scalar_lea.vmem [#allocation13], 4
    %393 = vst.msk [vmem:[%s392] sm:$0x3] %vm210, %v390
    %s394 = scalar_lea.vmem [#allocation4], 6
    %v395 = vld [vmem:[%s394] sm:$0x3]
    %v396 = vpack.c.bf16 %v386, %v386
    %398 = vrot.lane.b32.xlu0 %v396, 32
    %v399 = vpop.permute.xlu0 %398
    %v401 = vsel %vm119, %v399, 0
    %403 = vmatprep.subr.bf16.mxu0 0
    %404 = vmatpush1.bf16.msra.mxu0 %v115
    %405 = vmatprep.subr.bf16.mxu0 0
    %406 = vmatpush1.bf16.msra.mxu0 %v116
    %407 = vmatprep.subr.bf16.mxu0 0
    %408 = vmatpush1.bf16.msra.mxu0 0
    %409 = vmatprep.subr.bf16.mxu0 0
    %410 = vmatpush1.bf16.msra.mxu0 0
    %411 = vmatprep.subr.bf16.mxu0 0
    %412 = vmatpush1.bf16.msra.mxu0 0
    %413 = vmatprep.subr.bf16.mxu0 0
    %414 = vmatpush1.bf16.msra.mxu0 0
    %415 = vmatprep.subr.bf16.mxu0 0
    %416 = vmatpush1.bf16.msra.mxu0 0
    %417 = vmatprep.subr.bf16.mxu0 0
    %418 = vmatpush1.bf16.msra.mxu0 0
    %419 = vmatprep.subr.bf16.mxu0 0
    %420 = vmatpush1.bf16.msra.mxu0 0
    %421 = vmatprep.subr.bf16.mxu0 0
    %422 = vmatpush1.bf16.msra.mxu0 0
    %423 = vmatprep.subr.bf16.mxu0 0
    %424 = vmatpush1.bf16.msra.mxu0 0
    %425 = vmatprep.subr.bf16.mxu0 0
    %426 = vmatpush1.bf16.msra.mxu0 0
    %427 = vmatprep.subr.bf16.mxu0 0
    %428 = vmatpush1.bf16.msra.mxu0 0
    %429 = vmatprep.subr.bf16.mxu0 0
    %430 = vmatpush1.bf16.msra.mxu0 0
    %431 = vmatprep.subr.bf16.mxu0 0
    %432 = vmatpush1.bf16.msra.mxu0 0
    %433 = vmatprep.subr.bf16.mxu0 0
    %434 = vmatpush1.bf16.msra.mxu0 0
    %435 = vmatprep.mubr.bf16.mxu0 0
    %436 = vmatmul.mubr.bf16.gmra.mrb[0].mxu0 %v401
    %v437 = vpop.f32.mrb[0].mxu0
    %v438 = vadd.f32 0.0, %v437
    %v439 = vpop.f32.mrb[0].mxu0
    %v440 = vpop.f32.mrb[0].mxu0
    %v441 = vpop.f32.mrb[0].mxu0
    %442 = vdwg.mxu0
    %v443 = vadd.f32 %v395, %v438
    %v444 = vxor.u32 %v443, 2147483648
    %v445 = vmul.f32 %v444, 1.442695
    %v446 = vpow.pop %v445
    %v447 = vadd.f32 %v446, 1.0
    %v448 = vrcp.pop %v447
    %v449 = vmul.f32 1.0, %v448
    %v450 = vtanh.pop %v443
    %v451 = vmul.f32 %v449, %v385
    %453 = vrot.lane.b32.xlu0 %v450, 64
    %v454 = vpop.permute.xlu0 %453
    %v456 = vmul.f32 %v449, %v454
    %458 = vrot.lane.b32.xlu0 %v456, 32
    %v459 = vpop.permute.xlu0 %458
    %v461 = vadd.f32 %v451, %v459
    %v462 = vtanh.pop %v461
    %464 = vrot.lane.b32.xlu0 %v462, 64
    %v465 = vpop.permute.xlu0 %464
    %v467 = vmul.f32 %v449, %v465
    %s468 = sadd.s32 %s102, 3
    %v469 = vstv %s468
    %vm470 = vcmp.gt.s32.totalorder %v101, %v469
    %v471 = vsel %vm470, 1, 0
    %472 = vset.pattern.permute.xlu0 0
    %473 = vperm.xlu0 %472, %v471
    %v474 = vpop.permute.xlu0 %473
    %vm475 = vcmp.eq.s32.totalorder %v474, 1
    %v476 = vsel %vm475, %v461, %v385
    %v477 = vsel %vm475, %v467, %v386
    %v478 = vsel %vm475, %v467, 0.0
    %480 = vrot.lane.b32.xlu0 %v478, 32
    %v481 = vpop.permute.xlu0 %480
    %s483 = scalar_lea.vmem [#allocation13], 6
    %484 = vst.msk [vmem:[%s483] sm:$0x3] %vm210, %v481
    %s485 = scalar_lea.vmem [#allocation4], 8
    %v486 = vld [vmem:[%s485] sm:$0x3]
    %v487 = vpack.c.bf16 %v477, %v477
    %489 = vrot.lane.b32.xlu0 %v487, 32
    %v490 = vpop.permute.xlu0 %489
    %v492 = vsel %vm119, %v490, 0
    %494 = vmatprep.subr.bf16.mxu0 0
    %495 = vmatpush1.bf16.msra.mxu0 %v115
    %496 = vmatprep.subr.bf16.mxu0 0
    %497 = vmatpush1.bf16.msra.mxu0 %v116
    %498 = vmatprep.subr.bf16.mxu0 0
    %499 = vmatpush1.bf16.msra.mxu0 0
    %500 = vmatprep.subr.bf16.mxu0 0
    %501 = vmatpush1.bf16.msra.mxu0 0
    %502 = vmatprep.subr.bf16.mxu0 0
    %503 = vmatpush1.bf16.msra.mxu0 0
    %504 = vmatprep.subr.bf16.mxu0 0
    %505 = vmatpush1.bf16.msra.mxu0 0
    %506 = vmatprep.subr.bf16.mxu0 0
    %507 = vmatpush1.bf16.msra.mxu0 0
    %508 = vmatprep.subr.bf16.mxu0 0
    %509 = vmatpush1.bf16.msra.mxu0 0
    %510 = vmatprep.subr.bf16.mxu0 0
    %511 = vmatpush1.bf16.msra.mxu0 0
    %512 = vmatprep.subr.bf16.mxu0 0
    %513 = vmatpush1.bf16.msra.mxu0 0
    %514 = vmatprep.subr.bf16.mxu0 0
    %515 = vmatpush1.bf16.msra.mxu0 0
    %516 = vmatprep.subr.bf16.mxu0 0
    %517 = vmatpush1.bf16.msra.mxu0 0
    %518 = vmatprep.subr.bf16.mxu0 0
    %519 = vmatpush1.bf16.msra.mxu0 0
    %520 = vmatprep.subr.bf16.mxu0 0
    %521 = vmatpush1.bf16.msra.mxu0 0
    %522 = vmatprep.subr.bf16.mxu0 0
    %523 = vmatpush1.bf16.msra.mxu0 0
    %524 = vmatprep.subr.bf16.mxu0 0
    %525 = vmatpush1.bf16.msra.mxu0 0
    %526 = vmatprep.mubr.bf16.mxu0 0
    %527 = vmatmul.mubr.bf16.gmra.mrb[0].mxu0 %v492
    %v528 = vpop.f32.mrb[0].mxu0
    %v529 = vadd.f32 0.0, %v528
    %v530 = vpop.f32.mrb[0].mxu0
    %v531 = vpop.f32.mrb[0].mxu0
    %v532 = vpop.f32.mrb[0].mxu0
    %533 = vdwg.mxu0
    %v534 = vadd.f32 %v486, %v529
    %v535 = vxor.u32 %v534, 2147483648
    %v536 = vmul.f32 %v535, 1.442695
    %v537 = vpow.pop %v536
    %v538 = vadd.f32 %v537, 1.0
    %v539 = vrcp.pop %v538
    %v540 = vmul.f32 1.0, %v539
    %v541 = vtanh.pop %v534
    %v542 = vmul.f32 %v540, %v476
    %544 = vrot.lane.b32.xlu0 %v541, 64
    %v545 = vpop.permute.xlu0 %544
    %v547 = vmul.f32 %v540, %v545
    %549 = vrot.lane.b32.xlu0 %v547, 32
    %v550 = vpop.permute.xlu0 %549
    %v552 = vadd.f32 %v542, %v550
    %v553 = vtanh.pop %v552
    %555 = vrot.lane.b32.xlu0 %v553, 64
    %v556 = vpop.permute.xlu0 %555
    %v558 = vmul.f32 %v540, %v556
    %s559 = sadd.s32 %s102, 4
    %v560 = vstv %s559
    %vm561 = vcmp.gt.s32.totalorder %v101, %v560
    %v562 = vsel %vm561, 1, 0
    %563 = vset.pattern.permute.xlu0 0
    %564 = vperm.xlu0 %563, %v562
    %v565 = vpop.permute.xlu0 %564
    %vm566 = vcmp.eq.s32.totalorder %v565, 1
    %v567 = vsel %vm566, %v552, %v476
    %v568 = vsel %vm566, %v558, %v477
    %v569 = vsel %vm566, %v558, 0.0
    %571 = vrot.lane.b32.xlu0 %v569, 32
    %v572 = vpop.permute.xlu0 %571
    %s574 = scalar_lea.vmem [#allocation13], 8
    %575 = vst.msk [vmem:[%s574] sm:$0x3] %vm210, %v572
    %s576 = scalar_lea.vmem [#allocation4], 10
    %v577 = vld [vmem:[%s576] sm:$0x3]
    %v578 = vpack.c.bf16 %v568, %v568
    %580 = vrot.lane.b32.xlu0 %v578, 32
    %v581 = vpop.permute.xlu0 %580
    %v583 = vsel %vm119, %v581, 0
    %585 = vmatprep.subr.bf16.mxu0 0
    %586 = vmatpush1.bf16.msra.mxu0 %v115
    %587 = vmatprep.subr.bf16.mxu0 0
    %588 = vmatpush1.bf16.msra.mxu0 %v116
    %589 = vmatprep.subr.bf16.mxu0 0
    %590 = vmatpush1.bf16.msra.mxu0 0
    %591 = vmatprep.subr.bf16.mxu0 0
    %592 = vmatpush1.bf16.msra.mxu0 0
    %593 = vmatprep.subr.bf16.mxu0 0
    %594 = vmatpush1.bf16.msra.mxu0 0
    %595 = vmatprep.subr.bf16.mxu0 0
    %596 = vmatpush1.bf16.msra.mxu0 0
    %597 = vmatprep.subr.bf16.mxu0 0
    %598 = vmatpush1.bf16.msra.mxu0 0
    %599 = vmatprep.subr.bf16.mxu0 0
    %600 = vmatpush1.bf16.msra.mxu0 0
    %601 = vmatprep.subr.bf16.mxu0 0
    %602 = vmatpush1.bf16.msra.mxu0 0
    %603 = vmatprep.subr.bf16.mxu0 0
    %604 = vmatpush1.bf16.msra.mxu0 0
    %605 = vmatprep.subr.bf16.mxu0 0
    %606 = vmatpush1.bf16.msra.mxu0 0
    %607 = vmatprep.subr.bf16.mxu0 0
    %608 = vmatpush1.bf16.msra.mxu0 0
    %609 = vmatprep.subr.bf16.mxu0 0
    %610 = vmatpush1.bf16.msra.mxu0 0
    %611 = vmatprep.subr.bf16.mxu0 0
    %612 = vmatpush1.bf16.msra.mxu0 0
    %613 = vmatprep.subr.bf16.mxu0 0
    %614 = vmatpush1.bf16.msra.mxu0 0
    %615 = vmatprep.subr.bf16.mxu0 0
    %616 = vmatpush1.bf16.msra.mxu0 0
    %617 = vmatprep.mubr.bf16.mxu0 0
    %618 = vmatmul.mubr.bf16.gmra.mrb[0].mxu0 %v583
    %v619 = vpop.f32.mrb[0].mxu0
    %v620 = vadd.f32 0.0, %v619
    %v621 = vpop.f32.mrb[0].mxu0
    %v622 = vpop.f32.mrb[0].mxu0
    %v623 = vpop.f32.mrb[0].mxu0
    %624 = vdwg.mxu0
    %v625 = vadd.f32 %v577, %v620
    %v626 = vxor.u32 %v625, 2147483648
    %v627 = vmul.f32 %v626, 1.442695
    %v628 = vpow.pop %v627
    %v629 = vadd.f32 %v628, 1.0
    %v630 = vrcp.pop %v629
    %v631 = vmul.f32 1.0, %v630
    %v632 = vtanh.pop %v625
    %v633 = vmul.f32 %v631, %v567
    %635 = vrot.lane.b32.xlu0 %v632, 64
    %v636 = vpop.permute.xlu0 %635
    %v638 = vmul.f32 %v631, %v636
    %640 = vrot.lane.b32.xlu0 %v638, 32
    %v641 = vpop.permute.xlu0 %640
    %v643 = vadd.f32 %v633, %v641
    %v644 = vtanh.pop %v643
    %646 = vrot.lane.b32.xlu0 %v644, 64
    %v647 = vpop.permute.xlu0 %646
    %v649 = vmul.f32 %v631, %v647
    %s650 = sadd.s32 %s102, 5
    %v651 = vstv %s650
    %vm652 = vcmp.gt.s32.totalorder %v101, %v651
    %v653 = vsel %vm652, 1, 0
    %654 = vset.pattern.permute.xlu0 0
    %655 = vperm.xlu0 %654, %v653
    %v656 = vpop.permute.xlu0 %655
    %vm657 = vcmp.eq.s32.totalorder %v656, 1
    %v658 = vsel %vm657, %v643, %v567
    %v659 = vsel %vm657, %v649, %v568
    %v660 = vsel %vm657, %v649, 0.0
    %662 = vrot.lane.b32.xlu0 %v660, 32
    %v663 = vpop.permute.xlu0 %662
    %s665 = scalar_lea.vmem [#allocation13], 10
    %666 = vst.msk [vmem:[%s665] sm:$0x3] %vm210, %v663
    %s667 = scalar_lea.vmem [#allocation4], 12
    %v668 = vld [vmem:[%s667] sm:$0x3]
    %v669 = vpack.c.bf16 %v659, %v659
    %671 = vrot.lane.b32.xlu0 %v669, 32
    %v672 = vpop.permute.xlu0 %671
    %v674 = vsel %vm119, %v672, 0
    %676 = vmatprep.subr.bf16.mxu0 0
    %677 = vmatpush1.bf16.msra.mxu0 %v115
    %678 = vmatprep.subr.bf16.mxu0 0
    %679 = vmatpush1.bf16.msra.mxu0 %v116
    %680 = vmatprep.subr.bf16.mxu0 0
    %681 = vmatpush1.bf16.msra.mxu0 0
    %682 = vmatprep.subr.bf16.mxu0 0
    %683 = vmatpush1.bf16.msra.mxu0 0
    %684 = vmatprep.subr.bf16.mxu0 0
    %685 = vmatpush1.bf16.msra.mxu0 0
    %686 = vmatprep.subr.bf16.mxu0 0
    %687 = vmatpush1.bf16.msra.mxu0 0
    %688 = vmatprep.subr.bf16.mxu0 0
    %689 = vmatpush1.bf16.msra.mxu0 0
    %690 = vmatprep.subr.bf16.mxu0 0
    %691 = vmatpush1.bf16.msra.mxu0 0
    %692 = vmatprep.subr.bf16.mxu0 0
    %693 = vmatpush1.bf16.msra.mxu0 0
    %694 = vmatprep.subr.bf16.mxu0 0
    %695 = vmatpush1.bf16.msra.mxu0 0
    %696 = vmatprep.subr.bf16.mxu0 0
    %697 = vmatpush1.bf16.msra.mxu0 0
    %698 = vmatprep.subr.bf16.mxu0 0
    %699 = vmatpush1.bf16.msra.mxu0 0
    %700 = vmatprep.subr.bf16.mxu0 0
    %701 = vmatpush1.bf16.msra.mxu0 0
    %702 = vmatprep.subr.bf16.mxu0 0
    %703 = vmatpush1.bf16.msra.mxu0 0
    %704 = vmatprep.subr.bf16.mxu0 0
    %705 = vmatpush1.bf16.msra.mxu0 0
    %706 = vmatprep.subr.bf16.mxu0 0
    %707 = vmatpush1.bf16.msra.mxu0 0
    %708 = vmatprep.mubr.bf16.mxu0 0
    %709 = vmatmul.mubr.bf16.gmra.mrb[0].mxu0 %v674
    %v710 = vpop.f32.mrb[0].mxu0
    %v711 = vadd.f32 0.0, %v710
    %v712 = vpop.f32.mrb[0].mxu0
    %v713 = vpop.f32.mrb[0].mxu0
    %v714 = vpop.f32.mrb[0].mxu0
    %715 = vdwg.mxu0
    %v716 = vadd.f32 %v668, %v711
    %v717 = vxor.u32 %v716, 2147483648
    %v718 = vmul.f32 %v717, 1.442695
    %v719 = vpow.pop %v718
    %v720 = vadd.f32 %v719, 1.0
    %v721 = vrcp.pop %v720
    %v722 = vmul.f32 1.0, %v721
    %v723 = vtanh.pop %v716
    %v724 = vmul.f32 %v722, %v658
    %726 = vrot.lane.b32.xlu0 %v723, 64
    %v727 = vpop.permute.xlu0 %726
    %v729 = vmul.f32 %v722, %v727
    %731 = vrot.lane.b32.xlu0 %v729, 32
    %v732 = vpop.permute.xlu0 %731
    %v734 = vadd.f32 %v724, %v732
    %v735 = vtanh.pop %v734
    %737 = vrot.lane.b32.xlu0 %v735, 64
    %v738 = vpop.permute.xlu0 %737
    %v740 = vmul.f32 %v722, %v738
    %s741 = sadd.s32 %s102, 6
    %v742 = vstv %s741
    %vm743 = vcmp.gt.s32.totalorder %v101, %v742
    %v744 = vsel %vm743, 1, 0
    %745 = vset.pattern.permute.xlu0 0
    %746 = vperm.xlu0 %745, %v744
    %v747 = vpop.permute.xlu0 %746
    %vm748 = vcmp.eq.s32.totalorder %v747, 1
    %v749 = vsel %vm748, %v734, %v658
    %v750 = vsel %vm748, %v740, %v659
    %v751 = vsel %vm748, %v740, 0.0
    %753 = vrot.lane.b32.xlu0 %v751, 32
    %v754 = vpop.permute.xlu0 %753
    %s756 = scalar_lea.vmem [#allocation13], 12
    %757 = vst.msk [vmem:[%s756] sm:$0x3] %vm210, %v754
    %s758 = scalar_lea.vmem [#allocation4], 14
    %v759 = vld [vmem:[%s758] sm:$0x3]
    %v760 = vpack.c.bf16 %v750, %v750
    %762 = vrot.lane.b32.xlu0 %v760, 32
    %v763 = vpop.permute.xlu0 %762
    %v765 = vsel %vm119, %v763, 0
    %767 = vmatprep.subr.bf16.mxu0 0
    %768 = vmatpush1.bf16.msra.mxu0 %v115
    %769 = vmatprep.subr.bf16.mxu0 0
    %770 = vmatpush1.bf16.msra.mxu0 %v116
    %771 = vmatprep.subr.bf16.mxu0 0
    %772 = vmatpush1.bf16.msra.mxu0 0
    %773 = vmatprep.subr.bf16.mxu0 0
    %774 = vmatpush1.bf16.msra.mxu0 0
    %775 = vmatprep.subr.bf16.mxu0 0
    %776 = vmatpush1.bf16.msra.mxu0 0
    %777 = vmatprep.subr.bf16.mxu0 0
    %778 = vmatpush1.bf16.msra.mxu0 0
    %779 = vmatprep.subr.bf16.mxu0 0
    %780 = vmatpush1.bf16.msra.mxu0 0
    %781 = vmatprep.subr.bf16.mxu0 0
    %782 = vmatpush1.bf16.msra.mxu0 0
    %783 = vmatprep.subr.bf16.mxu0 0
    %784 = vmatpush1.bf16.msra.mxu0 0
    %785 = vmatprep.subr.bf16.mxu0 0
    %786 = vmatpush1.bf16.msra.mxu0 0
    %787 = vmatprep.subr.bf16.mxu0 0
    %788 = vmatpush1.bf16.msra.mxu0 0
    %789 = vmatprep.subr.bf16.mxu0 0
    %790 = vmatpush1.bf16.msra.mxu0 0
    %791 = vmatprep.subr.bf16.mxu0 0
    %792 = vmatpush1.bf16.msra.mxu0 0
    %793 = vmatprep.subr.bf16.mxu0 0
    %794 = vmatpush1.bf16.msra.mxu0 0
    %795 = vmatprep.subr.bf16.mxu0 0
    %796 = vmatpush1.bf16.msra.mxu0 0
    %797 = vmatprep.subr.bf16.mxu0 0
    %798 = vmatpush1.bf16.msra.mxu0 0
    %799 = vmatprep.mubr.bf16.mxu0 0
    %800 = vmatmul.mubr.bf16.gmra.mrb[0].mxu0 %v765
    %v801 = vpop.f32.mrb[0].mxu0
    %v802 = vadd.f32 0.0, %v801
    %v803 = vpop.f32.mrb[0].mxu0
    %v804 = vpop.f32.mrb[0].mxu0
    %v805 = vpop.f32.mrb[0].mxu0
    %806 = vdwg.mxu0
    %v807 = vadd.f32 %v759, %v802
    %v808 = vxor.u32 %v807, 2147483648
    %v809 = vmul.f32 %v808, 1.442695
    %v810 = vpow.pop %v809
    %v811 = vadd.f32 %v810, 1.0
    %v812 = vrcp.pop %v811
    %v813 = vmul.f32 1.0, %v812
    %v814 = vtanh.pop %v807
    %v815 = vmul.f32 %v813, %v749
    %817 = vrot.lane.b32.xlu0 %v814, 64
    %v818 = vpop.permute.xlu0 %817
    %v820 = vmul.f32 %v813, %v818
    %822 = vrot.lane.b32.xlu0 %v820, 32
    %v823 = vpop.permute.xlu0 %822
    %v825 = vadd.f32 %v815, %v823
    %v826 = vtanh.pop %v825
    %828 = vrot.lane.b32.xlu0 %v826, 64
    %v829 = vpop.permute.xlu0 %828
    %v831 = vmul.f32 %v813, %v829
    %s832 = sadd.s32 %s102, 7
    %v833 = vstv %s832
    %vm834 = vcmp.gt.s32.totalorder %v101, %v833
    %v835 = vsel %vm834, 1, 0
    %836 = vset.pattern.permute.xlu0 0
    %837 = vperm.xlu0 %836, %v835
    %v838 = vpop.permute.xlu0 %837
    %vm839 = vcmp.eq.s32.totalorder %v838, 1
    %v840 = vsel %vm839, %v825, %v749
    %v841 = vsel %vm839, %v831, %v750
    %v842 = vsel %vm839, %v831, 0.0
    %844 = vrot.lane.b32.xlu0 %v842, 32
    %v845 = vpop.permute.xlu0 %844
    %s847 = scalar_lea.vmem [#allocation13], 14
    %848 = vst.msk [vmem:[%s847] sm:$0x3] %vm210, %v845
    %850 = vrot.lane.b32.xlu0 %v841, 32
    %v851 = vpop.permute.xlu0 %850
    %853 = vst.msk [vmem:[#allocation2] sm:$0x3] %vm210, %v851
    %855 = vrot.lane.b32.xlu0 %v840, 96
    %v856 = vpop.permute.xlu0 %855
    %858 = vst.msk [vmem:[#allocation3] sm:$0x3] %vm210, %v856
    // Predicated region
    $region46: #{lm_lstm_forward.4} parent=1 // pred_check
      %p859 = pneg %p88
    $region47: #{lm_lstm_forward.4} parent=1 // pred_check_branch
      %861 = sbr.rel (%p859) target = $region49
    $region48: #{lm_lstm_forward.4} parent=1 // pred_region
      %862 = vst.msk [vmem:[#allocation14] sm:$0x3] %vm210, %v851
      %863 = vst.msk [vmem:[#allocation16] sm:$0x3] %vm210, %v856
    $region49: #{lm_lstm_forward.4} parent=1 // pred_fallthru
      _
    // Predicated region
    $region50: #{lm_lstm_forward.4} parent=1 // pred_check
      _
    $region51: #{lm_lstm_forward.4} parent=1 // pred_check_branch
      %865 = sbr.rel (0) target = $region53
    $region52: #{lm_lstm_forward.4} parent=1 // pred_region
      %s867 = ssub.s32 256, 256
      %868 = vsyncadd [#allocation6], %s867
      %s869 = sshll.u32 [#allocation13], 4
      %s870 = int_to_ptr.vmem [resolvable:$true] %s869
      %875 = dma.vmem_to_hbm [thread:$0]  %s870, 256, %s5, [#allocation6], 32, 32, 2
    $region53: #{lm_lstm_forward.4} parent=1 // pred_fallthru
      _
    // Predicated region
    $region54: #{lm_lstm_forward.4} parent=1 // pred_check
      _
    $region55: #{lm_lstm_forward.4} parent=1 // pred_check_branch
      %877 = sbr.rel (0) target = $region57
    $region56: #{lm_lstm_forward.4} parent=1 // pred_region
      %s879 = ssub.s32 32, 32
      %880 = vsyncadd [#allocation15], %s879
      %s882 = sshll.u32 [#allocation14], 4
      %s883 = int_to_ptr.vmem [resolvable:$true] %s882
      %885 = dma.vmem_to_hbm [thread:$0]  %s883, 32, %s6, [#allocation15]
    $region57: #{lm_lstm_forward.4} parent=1 // pred_fallthru
      _
    // Predicated region
    $region58: #{lm_lstm_forward.4} parent=1 // pred_check
      _
    $region59: #{lm_lstm_forward.4} parent=1 // pred_check_branch
      %887 = sbr.rel (0) target = $region61
    $region60: #{lm_lstm_forward.4} parent=1 // pred_region
      %s889 = ssub.s32 32, 32
      %890 = vsyncadd [#allocation15], %s889
      %s892 = sshll.u32 [#allocation16], 4
      %s893 = int_to_ptr.vmem [resolvable:$true] %s892
      %895 = dma.vmem_to_hbm [thread:$0]  %s893, 32, %s7, [#allocation15]
    $region61: #{lm_lstm_forward.4} parent=1 // pred_fallthru
      _
    // Predicated region
    $region62: #{lm_lstm_forward.4} parent=1 // pred_check
      _
    $region63: #{lm_lstm_forward.4} parent=1 // pred_check_branch
      %897 = sbr.rel (0) target = $region65
    $region64: #{lm_lstm_forward.4} parent=1 // pred_region
      %898 = dma.done [#allocation6], 256
    $region65: #{lm_lstm_forward.4} parent=1 // pred_fallthru
      _
    // Predicated region
    $region66: #{lm_lstm_forward.4} parent=1 // pred_check
      _
    $region67: #{lm_lstm_forward.4} parent=1 // pred_check_branch
      %900 = sbr.rel (0) target = $region69
    $region68: #{lm_lstm_forward.4} parent=1 // pred_region
      %901 = dma.done [#allocation15], 32
    $region69: #{lm_lstm_forward.4} parent=1 // pred_fallthru
      _
    // Predicated region
    $region70: #{lm_lstm_forward.4} parent=1 // pred_check
      _
    $region71: #{lm_lstm_forward.4} parent=1 // pred_check_branch
      %903 = sbr.rel (0) target = $region73
    $region72: #{lm_lstm_forward.4} parent=1 // pred_region
      %904 = dma.done [#allocation15], 32
    $region73: #{lm_lstm_forward.4} parent=1 // pred_fallthru
      _
    %905 = vsyncpa [#allocation5], 1
    %906 = vsyncpa [#allocation8], 1
    %907 = vsyncpa [#allocation11], 1
    %908 = vsyncpa [#allocation6], 1
    %909 = vsyncpa [#allocation15], 1

</llo_original>
